<compile_context>
chip_gen: v5e
topology: v5e:2x2
jax: 0.10.0
libtpu: 0.0.40
codegen_flags: <defaults>
</compile_context>

<pallas_src>
import functools
import math

import jax
import jax.numpy as jnp
from jax import lax
from jax.experimental import pallas as pl
from jax.experimental.pallas import tpu as pltpu

# ------------------------- model hyper-parameters ---------------------------
N_LAYERS = 2
N_HEADS = 2
D_EMB = 32
D_MODEL = 16   # per-head dim
D_FF = 64
LN_EPS = 1e-5


def _layer_norm(x, gamma, beta):
    # PyTorch nn.LayerNorm: biased variance over last dim, eps=1e-5, affine.
    mu = jnp.mean(x, axis=-1, keepdims=True)
    var = jnp.mean((x - mu) ** 2, axis=-1, keepdims=True)
    return (x - mu) * jax.lax.rsqrt(var + LN_EPS) * gamma + beta


# --------------------------- packed parameter slab ---------------------------
def _round_up(n, m):
    return (n + m - 1) // m * m


def param_layout(d_emb, n_heads, d_model, d_ff):
    """Row layout of the packed per-layer parameter slab (rows x lanes), 8-row aligned."""
    hd = n_heads * d_model
    lanes = max(128, 4 * hd, d_ff, d_emb)
    layout = {}
    r = 0

    def add(name, n_rows, n_cols):
        nonlocal r
        r = _round_up(r, 8)
        layout[name] = (r, n_rows, n_cols)
        r += n_rows

    add("wqkvg", d_emb, 4 * hd)   # [wq|wk|wv|wg] packed along lanes -> (32, 128)
    add("bqkvg", 1, 4 * hd)
    add("wo", hd, d_emb)
    add("bo", 1, d_emb)
    add("ln1_g", 1, d_emb)
    add("ln1_b", 1, d_emb)
    add("b1", 1, d_ff)
    add("b2", 1, d_emb)
    add("ln2_g", 1, d_emb)
    add("ln2_b", 1, d_emb)
    add("w1", d_emb, d_ff)
    add("w2", d_ff, d_emb)
    n_rows = _round_up(r, 8)
    return layout, n_rows, lanes


def pack_layer_params(p, layout, n_rows, lanes):
    """Pack one layer's 18 tensors into a single (n_rows, lanes) f32 slab."""
    packed = dict(p)
    packed["wqkvg"] = jnp.concatenate([p["wq"], p["wk"], p["wv"], p["wg"]], axis=1)
    packed["bqkvg"] = jnp.concatenate([p["bq"], p["bk"], p["bv"], p["bg"]], axis=1)
    buf = jnp.zeros((n_rows, lanes), jnp.float32)
    for name, (r0, nr, nc) in layout.items():
        arr = packed[name].reshape(nr, nc).astype(jnp.float32)
        buf = buf.at[r0:r0 + nr, 0:nc].set(arr)
    return buf


# ------------------------------- Pallas kernel ------------------------------
def regulation_transformer_kernel(
    x_ref, mb_ref, params_ref, o_ref,
    *, n_layers, n_heads, d_model, d_emb, d_ff, layout,
):
    f32 = jnp.float32
    x = x_ref[0].astype(f32)    # (T, E)
    mb = mb_ref[0].astype(f32)  # (T, T) additive bias with mask folded in (-1e9 at masked)
    T = x.shape[0]
    hd = n_heads * d_model
    scale = 1.0 / math.sqrt(d_model)
    wo_r0, _, wo_nc = layout["wo"]

    for l in range(n_layers):          # static unroll over fused layers
        def rd(name, _l=l):
            r0, nr, nc = layout[name]
            return params_ref[_l, r0:r0 + nr, 0:nc]

        # Fused q|k|v|g projection: one lane-dense (E, 4*hd) = (32, 128) MXU pass.
        qkvg = jnp.dot(x, rd("wqkvg"), preferred_element_type=f32) + rd("bqkvg")

        proj = jnp.zeros((T, d_emb), f32)
        for h in range(n_heads):       # static unroll over heads
            lo = h * d_model
            qh = qkvg[:, lo:lo + d_model]
            kh = qkvg[:, hd + lo:hd + lo + d_model]
            vh = qkvg[:, 2 * hd + lo:2 * hd + lo + d_model]
            gh = qkvg[:, 3 * hd + lo:3 * hd + lo + d_model]

            # q k^T by contracting last dims (feeds MXU directly, no XLU transpose).
            scores = lax.dot_general(
                qh, kh, (((1,), (1,)), ((), ())),
                preferred_element_type=f32) * scale + mb
            scores = scores - jnp.max(scores, axis=-1, keepdims=True)
            p = jnp.exp(scores)
            attn = p * pl.reciprocal(jnp.sum(p, axis=-1, keepdims=True), approx=True)
            oh = jnp.dot(attn, vh, preferred_element_type=f32) * jax.nn.sigmoid(gh)

            # Accumulate per-head output projection (avoids jnp.concatenate re-layout).
            woh = params_ref[l, wo_r0 + lo:wo_r0 + lo + d_model, 0:wo_nc]
            proj = proj + jnp.dot(oh, woh, preferred_element_type=f32)

        attn_out = proj + rd("bo")

        # residual + LayerNorm 1
        h1 = _layer_norm(x + attn_out, rd("ln1_g"), rd("ln1_b"))

        # position-wise feed-forward (ReLU)
        ff = jnp.dot(h1, rd("w1"), preferred_element_type=f32) + rd("b1")
        ff = jnp.maximum(ff, 0.0)
        ff = jnp.dot(ff, rd("w2"), preferred_element_type=f32) + rd("b2")

        # residual + LayerNorm 2
        x = _layer_norm(h1 + ff, rd("ln2_g"), rd("ln2_b"))

    o_ref[0] = x.astype(o_ref.dtype)


def regulation_transformer_pallas(x, mask, bias, layer_params, *, n_heads, d_model):
    B, T, E = x.shape
    n_layers = len(layer_params)
    d_ff = layer_params[0]["w1"].shape[1]
    layout, n_rows, lanes = param_layout(E, n_heads, d_model, d_ff)

    # Fold the attention mask into the additive bias in the wrapper:
    #   masked positions get score + bias - 1e9 -> exp underflows to 0, matching
    #   torch's masked_fill(-1e9) semantics in f32, while halving (B,T,T) DMA traffic.
    mask_bias = (bias + jnp.where(mask == 0, -1e9, 0.0)).astype(jnp.float32)

    # One packed parameter slab for ALL layers -> a single parameter DMA.
    packed = jnp.stack(
        [pack_layer_params(p, layout, n_rows, lanes) for p in layer_params])

    kernel = functools.partial(
        regulation_transformer_kernel,
        n_layers=n_layers, n_heads=n_heads, d_model=d_model,
        d_emb=E, d_ff=d_ff, layout=layout)

    return pl.pallas_call(
        kernel,
        out_shape=jax.ShapeDtypeStruct((B, T, E), jnp.float32),
        grid=(B,),
        in_specs=[
            pl.BlockSpec((1, T, E), lambda b: (b, 0, 0)),
            pl.BlockSpec((1, T, T), lambda b: (b, 0, 0)),
            pl.BlockSpec((n_layers, n_rows, lanes), lambda b: (0, 0, 0)),
        ],
        out_specs=pl.BlockSpec((1, T, E), lambda b: (b, 0, 0)),
        compiler_params=pltpu.CompilerParams(
            dimension_semantics=("parallel",)),  # b=0 / b=1 shard across TCs on v7x
    )(x, mask_bias, packed)


# --------------------------- pure-JAX reference ------------------------------
def encoder_layer_ref(x, mask, bias, p, *, n_heads, d_model):
    q = x @ p["wq"] + p["bq"]
    k = x @ p["wk"] + p["bk"]
    v = x @ p["wv"] + p["bv"]
    g = x @ p["wg"] + p["bg"]
    B, T, _ = x.shape
    rs = lambda a: a.reshape(B, T, n_heads, d_model).transpose(0, 2, 1, 3)
    q, k, v, g = rs(q), rs(k), rs(v), rs(g)
    scores = jnp.einsum("bhqd,bhkd->bhqk", q, k) / math.sqrt(d_model)
    scores = scores + bias[:, None, :, :]
    scores = jnp.where(mask[:, None, :, :] == 0, -1e9, scores)
    attn = jax.nn.softmax(scores, axis=-1)
    o = jnp.einsum("bhqk,bhkd->bhqd", attn, v) * jax.nn.sigmoid(g)
    o = o.transpose(0, 2, 1, 3).reshape(B, T, n_heads * d_model)
    o = o @ p["wo"] + p["bo"]
    h1 = _layer_norm(x + o, p["ln1_g"], p["ln1_b"])
    ff = jnp.maximum(h1 @ p["w1"] + p["b1"], 0.0) @ p["w2"] + p["b2"]
    return _layer_norm(h1 + ff, p["ln2_g"], p["ln2_b"])


def regulation_transformer_ref(x, mask, bias, layer_params, *, n_heads, d_model):
    for p in layer_params:
        x = encoder_layer_ref(x, mask, bias, p, n_heads=n_heads, d_model=d_model)
    return x


# ------------------------------- param init ---------------------------------
def init_layer_params(key, d_emb, n_heads, d_model, d_ff):
    hd = n_heads * d_model
    ks = jax.random.split(key, 12)
    s = 0.1
    return {
        "wq": s * jax.random.normal(ks[0], (d_emb, hd), jnp.float32),
        "bq": s * jax.random.normal(ks[1], (1, hd), jnp.float32),
        "wk": s * jax.random.normal(ks[2], (d_emb, hd), jnp.float32),
        "bk": s * jax.random.normal(ks[3], (1, hd), jnp.float32),
        "wv": s * jax.random.normal(ks[4], (d_emb, hd), jnp.float32),
        "bv": s * jax.random.normal(ks[5], (1, hd), jnp.float32),
        "wg": s * jax.random.normal(ks[6], (d_emb, hd), jnp.float32),
        "bg": s * jax.random.normal(ks[7], (1, hd), jnp.float32),
        "wo": s * jax.random.normal(ks[8], (hd, d_emb), jnp.float32),
        "bo": s * jax.random.normal(ks[9], (1, d_emb), jnp.float32),
        "ln1_g": jnp.ones((1, d_emb), jnp.float32),
        "ln1_b": jnp.zeros((1, d_emb), jnp.float32),
        "w1": s * jax.random.normal(ks[10], (d_emb, d_ff), jnp.float32),
        "b1": jnp.zeros((1, d_ff), jnp.float32),
        "w2": s * jax.random.normal(ks[11], (d_ff, d_emb), jnp.float32),
        "b2": jnp.zeros((1, d_emb), jnp.float32),
        "ln2_g": jnp.ones((1, d_emb), jnp.float32),
        "ln2_b": jnp.zeros((1, d_emb), jnp.float32),
    }


if __name__ == "__main__":
    B, T = 2, 8
    key = jax.random.PRNGKey(0)
    k_x, k_bias, k_params = jax.random.split(key, 3)

    x = jax.random.normal(k_x, (B, T, D_EMB), jnp.float32)

    # key-padding style mask: batch 0 attends to first 6 tokens, batch 1 to all 8
    valid_len = jnp.array([6, 8], jnp.int32)
    key_valid = (jnp.arange(T)[None, :] < valid_len[:, None]).astype(jnp.float32)  # (B, T)
    mask = jnp.broadcast_to(key_valid[:, None, :], (B, T, T))                       # (B, T, T)

    # attention bias (e.g. normalized interaction frequency), broadcast over heads
    bias = 0.5 * jax.random.normal(k_bias, (B, T, T), jnp.float32)

    layer_keys = jax.random.split(k_params, N_LAYERS)
    layer_params = [
        init_layer_params(lk, D_EMB, N_HEADS, D_MODEL, D_FF) for lk in layer_keys
    ]

    out = regulation_transformer_pallas(
        x, mask, bias, layer_params, n_heads=N_HEADS, d_model=D_MODEL
    )
    out = jax.block_until_ready(out)

    ref = regulation_transformer_ref(
        x, mask, bias, layer_params, n_heads=N_HEADS, d_model=D_MODEL
    )
    assert out.shape == (B, T, D_EMB)
    assert jnp.allclose(out, ref, atol=1e-3, rtol=1e-3), "mismatch vs reference"

    print("KERNEL_OK")
</pallas_src>

<mosaic_0001>
module attributes {stable_mosaic.version = 11 : i64} {
  func.func @regulation_transformer_kernel(%arg0: i32, %arg1: memref<1x8x32xf32, #tpu.memory_space<vmem>>, %arg2: memref<1x8x8xf32, #tpu.memory_space<vmem>>, %arg3: memref<2x224x128xf32, #tpu.memory_space<vmem>>, %arg4: memref<1x8x32xf32, #tpu.memory_space<vmem>>) attributes {dimension_semantics = [#tpu.dimension_semantics<parallel>], iteration_bounds = array<i64: 2>, scalar_prefetch = 0 : i64, scratch_operands = 0 : i64, tpu.core_type = #tpu.core_type<tc>, window_params = [{transform_indices = @transform_0, window_bounds = array<i64: 1, 8, 32>}, {transform_indices = @transform_1, window_bounds = array<i64: 1, 8, 8>}, {pipeline_mode = #tpu.pipeline_mode<synchronous>, transform_indices = @transform_2, window_bounds = array<i64: 2, 224, 128>}, {transform_indices = @transform_3, window_bounds = array<i64: 1, 8, 32>}]} {
    %c0 = arith.constant 0 : index
    %c0_0 = arith.constant 0 : index
    %c0_1 = arith.constant 0 : index
    %0 = vector.load %arg1[%c0, %c0_0, %c0_1] : memref<1x8x32xf32, #tpu.memory_space<vmem>>, vector<1x8x32xf32>
    %1 = vector.shape_cast %0 : vector<1x8x32xf32> to vector<8x32xf32>
    %c0_2 = arith.constant 0 : index
    %c0_3 = arith.constant 0 : index
    %c0_4 = arith.constant 0 : index
    %2 = vector.load %arg2[%c0_2, %c0_3, %c0_4] : memref<1x8x8xf32, #tpu.memory_space<vmem>>, vector<1x8x8xf32>
    %3 = vector.shape_cast %2 : vector<1x8x8xf32> to vector<8x8xf32>
    %c0_5 = arith.constant 0 : index
    %c0_6 = arith.constant 0 : index
    %c0_7 = arith.constant 0 : index
    %4 = vector.load %arg3[%c0_5, %c0_6, %c0_7] : memref<2x224x128xf32, #tpu.memory_space<vmem>>, vector<1x32x128xf32>
    %5 = vector.shape_cast %4 : vector<1x32x128xf32> to vector<32x128xf32>
    %cst = arith.constant dense<0.000000e+00> : vector<8x128xf32>
    %6 = tpu.matmul %1, %5, %cst {dimension_numbers = #tpu.dot_dimension_numbers<[1], [0], [0], [1], [0, 0, 1, 1], [], []>} : vector<8x32xf32>, vector<32x128xf32>, vector<8x128xf32> -> vector<8x128xf32>
    %c0_8 = arith.constant 0 : index
    %c32 = arith.constant 32 : index
    %c0_9 = arith.constant 0 : index
    %7 = vector.load %arg3[%c0_8, %c32, %c0_9] : memref<2x224x128xf32, #tpu.memory_space<vmem>>, vector<1x1x128xf32>
    %8 = vector.shape_cast %7 : vector<1x1x128xf32> to vector<1x128xf32>
    %9 = vector.broadcast %8 : vector<1x128xf32> to vector<8x128xf32>
    %10 = arith.addf %6, %9 : vector<8x128xf32>
    %cst_10 = arith.constant 0.000000e+00 : f32
    %11 = vector.broadcast %cst_10 : f32 to vector<8x32xf32>
    %12 = vector.extract_strided_slice %10 {offsets = [0, 0], sizes = [8, 16], strides = [1, 1]} : vector<8x128xf32> to vector<8x16xf32>
    %13 = vector.extract_strided_slice %10 {offsets = [0, 32], sizes = [8, 16], strides = [1, 1]} : vector<8x128xf32> to vector<8x16xf32>
    %14 = vector.extract_strided_slice %10 {offsets = [0, 64], sizes = [8, 16], strides = [1, 1]} : vector<8x128xf32> to vector<8x16xf32>
    %15 = vector.extract_strided_slice %10 {offsets = [0, 96], sizes = [8, 16], strides = [1, 1]} : vector<8x128xf32> to vector<8x16xf32>
    %cst_11 = arith.constant dense<0.000000e+00> : vector<8x8xf32>
    %16 = tpu.matmul %12, %13, %cst_11 {dimension_numbers = #tpu.dot_dimension_numbers<[1], [1], [0], [0], [0, 0, 1, 0], [], []>} : vector<8x16xf32>, vector<8x16xf32>, vector<8x8xf32> -> vector<8x8xf32>
    %cst_12 = arith.constant 2.500000e-01 : f32
    %17 = vector.broadcast %cst_12 : f32 to vector<8x8xf32>
    %18 = arith.mulf %16, %17 : vector<8x8xf32>
    %19 = arith.addf %18, %3 : vector<8x8xf32>
    %cst_13 = arith.constant dense<0xFF800000> : vector<8xf32>
    %20 = vector.multi_reduction <maximumf>, %19, %cst_13 [1] : vector<8x8xf32> to vector<8xf32>
    %21 = vector.shape_cast %20 : vector<8xf32> to vector<8x1xf32>
    %22 = vector.broadcast %21 : vector<8x1xf32> to vector<8x8xf32>
    %23 = arith.subf %19, %22 : vector<8x8xf32>
    %24 = math.exp %23 : vector<8x8xf32>
    %cst_14 = arith.constant dense<0.000000e+00> : vector<8xf32>
    %25 = vector.multi_reduction <add>, %24, %cst_14 [1] : vector<8x8xf32> to vector<8xf32>
    %26 = vector.shape_cast %25 : vector<8xf32> to vector<8x1xf32>
    %27 = tpu.reciprocal %26 {approx = true} : vector<8x1xf32> -> vector<8x1xf32>
    %28 = vector.broadcast %27 : vector<8x1xf32> to vector<8x8xf32>
    %29 = arith.mulf %24, %28 : vector<8x8xf32>
    %cst_15 = arith.constant dense<0.000000e+00> : vector<8x16xf32>
    %30 = tpu.matmul %29, %14, %cst_15 {dimension_numbers = #tpu.dot_dimension_numbers<[1], [0], [0], [1], [0, 0, 1, 1], [], []>} : vector<8x8xf32>, vector<8x16xf32>, vector<8x16xf32> -> vector<8x16xf32>
    %31 = arith.negf %15 : vector<8x16xf32>
    %32 = math.exp %31 : vector<8x16xf32>
    %cst_16 = arith.constant 1.000000e+00 : f32
    %33 = vector.broadcast %cst_16 : f32 to vector<8x16xf32>
    %34 = arith.addf %33, %32 : vector<8x16xf32>
    %35 = arith.divf %33, %34 : vector<8x16xf32>
    %36 = arith.mulf %30, %35 : vector<8x16xf32>
    %c0_17 = arith.constant 0 : index
    %c40 = arith.constant 40 : index
    %c0_18 = arith.constant 0 : index
    %37 = vector.load %arg3[%c0_17, %c40, %c0_18] : memref<2x224x128xf32, #tpu.memory_space<vmem>>, vector<1x16x32xf32>
    %38 = vector.shape_cast %37 : vector<1x16x32xf32> to vector<16x32xf32>
    %cst_19 = arith.constant dense<0.000000e+00> : vector<8x32xf32>
    %39 = tpu.matmul %36, %38, %cst_19 {dimension_numbers = #tpu.dot_dimension_numbers<[1], [0], [0], [1], [0, 0, 1, 1], [], []>} : vector<8x16xf32>, vector<16x32xf32>, vector<8x32xf32> -> vector<8x32xf32>
    %40 = arith.addf %11, %39 : vector<8x32xf32>
    %41 = vector.extract_strided_slice %10 {offsets = [0, 16], sizes = [8, 16], strides = [1, 1]} : vector<8x128xf32> to vector<8x16xf32>
    %42 = vector.extract_strided_slice %10 {offsets = [0, 48], sizes = [8, 16], strides = [1, 1]} : vector<8x128xf32> to vector<8x16xf32>
    %43 = vector.extract_strided_slice %10 {offsets = [0, 80], sizes = [8, 16], strides = [1, 1]} : vector<8x128xf32> to vector<8x16xf32>
    %44 = vector.extract_strided_slice %10 {offsets = [0, 112], sizes = [8, 16], strides = [1, 1]} : vector<8x128xf32> to vector<8x16xf32>
    %cst_20 = arith.constant dense<0.000000e+00> : vector<8x8xf32>
    %45 = tpu.matmul %41, %42, %cst_20 {dimension_numbers = #tpu.dot_dimension_numbers<[1], [1], [0], [0], [0, 0, 1, 0], [], []>} : vector<8x16xf32>, vector<8x16xf32>, vector<8x8xf32> -> vector<8x8xf32>
    %cst_21 = arith.constant 2.500000e-01 : f32
    %46 = vector.broadcast %cst_21 : f32 to vector<8x8xf32>
    %47 = arith.mulf %45, %46 : vector<8x8xf32>
    %48 = arith.addf %47, %3 : vector<8x8xf32>
    %cst_22 = arith.constant dense<0xFF800000> : vector<8xf32>
    %49 = vector.multi_reduction <maximumf>, %48, %cst_22 [1] : vector<8x8xf32> to vector<8xf32>
    %50 = vector.shape_cast %49 : vector<8xf32> to vector<8x1xf32>
    %51 = vector.broadcast %50 : vector<8x1xf32> to vector<8x8xf32>
    %52 = arith.subf %48, %51 : vector<8x8xf32>
    %53 = math.exp %52 : vector<8x8xf32>
    %cst_23 = arith.constant dense<0.000000e+00> : vector<8xf32>
    %54 = vector.multi_reduction <add>, %53, %cst_23 [1] : vector<8x8xf32> to vector<8xf32>
    %55 = vector.shape_cast %54 : vector<8xf32> to vector<8x1xf32>
    %56 = tpu.reciprocal %55 {approx = true} : vector<8x1xf32> -> vector<8x1xf32>
    %57 = vector.broadcast %56 : vector<8x1xf32> to vector<8x8xf32>
    %58 = arith.mulf %53, %57 : vector<8x8xf32>
    %cst_24 = arith.constant dense<0.000000e+00> : vector<8x16xf32>
    %59 = tpu.matmul %58, %43, %cst_24 {dimension_numbers = #tpu.dot_dimension_numbers<[1], [0], [0], [1], [0, 0, 1, 1], [], []>} : vector<8x8xf32>, vector<8x16xf32>, vector<8x16xf32> -> vector<8x16xf32>
    %60 = arith.negf %44 : vector<8x16xf32>
    %61 = math.exp %60 : vector<8x16xf32>
    %cst_25 = arith.constant 1.000000e+00 : f32
    %62 = vector.broadcast %cst_25 : f32 to vector<8x16xf32>
    %63 = arith.addf %62, %61 : vector<8x16xf32>
    %64 = arith.divf %62, %63 : vector<8x16xf32>
    %65 = arith.mulf %59, %64 : vector<8x16xf32>
    %c0_26 = arith.constant 0 : index
    %c56 = arith.constant 56 : index
    %c0_27 = arith.constant 0 : index
    %66 = vector.load %arg3[%c0_26, %c56, %c0_27] : memref<2x224x128xf32, #tpu.memory_space<vmem>>, vector<1x16x32xf32>
    %67 = vector.shape_cast %66 : vector<1x16x32xf32> to vector<16x32xf32>
    %cst_28 = arith.constant dense<0.000000e+00> : vector<8x32xf32>
    %68 = tpu.matmul %65, %67, %cst_28 {dimension_numbers = #tpu.dot_dimension_numbers<[1], [0], [0], [1], [0, 0, 1, 1], [], []>} : vector<8x16xf32>, vector<16x32xf32>, vector<8x32xf32> -> vector<8x32xf32>
    %69 = arith.addf %40, %68 : vector<8x32xf32>
    %c0_29 = arith.constant 0 : index
    %c72 = arith.constant 72 : index
    %c0_30 = arith.constant 0 : index
    %70 = vector.load %arg3[%c0_29, %c72, %c0_30] : memref<2x224x128xf32, #tpu.memory_space<vmem>>, vector<1x1x32xf32>
    %71 = vector.shape_cast %70 : vector<1x1x32xf32> to vector<1x32xf32>
    %72 = vector.broadcast %71 : vector<1x32xf32> to vector<8x32xf32>
    %73 = arith.addf %69, %72 : vector<8x32xf32>
    %74 = arith.addf %1, %73 : vector<8x32xf32>
    %c0_31 = arith.constant 0 : index
    %c80 = arith.constant 80 : index
    %c0_32 = arith.constant 0 : index
    %75 = vector.load %arg3[%c0_31, %c80, %c0_32] : memref<2x224x128xf32, #tpu.memory_space<vmem>>, vector<1x1x32xf32>
    %76 = vector.shape_cast %75 : vector<1x1x32xf32> to vector<1x32xf32>
    %c0_33 = arith.constant 0 : index
    %c88 = arith.constant 88 : index
    %c0_34 = arith.constant 0 : index
    %77 = vector.load %arg3[%c0_33, %c88, %c0_34] : memref<2x224x128xf32, #tpu.memory_space<vmem>>, vector<1x1x32xf32>
    %78 = vector.shape_cast %77 : vector<1x1x32xf32> to vector<1x32xf32>
    %cst_35 = arith.constant dense<0.000000e+00> : vector<8xf32>
    %79 = vector.multi_reduction <add>, %74, %cst_35 [1] : vector<8x32xf32> to vector<8xf32>
    %80 = vector.shape_cast %79 : vector<8xf32> to vector<8x1xf32>
    %cst_36 = arith.constant 3.200000e+01 : f32
    %81 = vector.broadcast %cst_36 : f32 to vector<8x1xf32>
    %82 = arith.divf %80, %81 : vector<8x1xf32>
    %83 = vector.broadcast %82 : vector<8x1xf32> to vector<8x32xf32>
    %84 = arith.subf %74, %83 : vector<8x32xf32>
    %85 = arith.mulf %84, %84 : vector<8x32xf32>
    %cst_37 = arith.constant dense<0.000000e+00> : vector<8xf32>
    %86 = vector.multi_reduction <add>, %85, %cst_37 [1] : vector<8x32xf32> to vector<8xf32>
    %87 = vector.shape_cast %86 : vector<8xf32> to vector<8x1xf32>
    %cst_38 = arith.constant 3.200000e+01 : f32
    %88 = vector.broadcast %cst_38 : f32 to vector<8x1xf32>
    %89 = arith.divf %87, %88 : vector<8x1xf32>
    %90 = vector.broadcast %82 : vector<8x1xf32> to vector<8x32xf32>
    %91 = arith.subf %74, %90 : vector<8x32xf32>
    %cst_39 = arith.constant 9.99999974E-6 : f32
    %92 = vector.broadcast %cst_39 : f32 to vector<8x1xf32>
    %93 = arith.addf %89, %92 : vector<8x1xf32>
    %94 = math.rsqrt %93 : vector<8x1xf32>
    %95 = vector.broadcast %94 : vector<8x1xf32> to vector<8x32xf32>
    %96 = arith.mulf %91, %95 : vector<8x32xf32>
    %97 = vector.broadcast %76 : vector<1x32xf32> to vector<8x32xf32>
    %98 = arith.mulf %96, %97 : vector<8x32xf32>
    %99 = vector.broadcast %78 : vector<1x32xf32> to vector<8x32xf32>
    %100 = arith.addf %98, %99 : vector<8x32xf32>
    %c0_40 = arith.constant 0 : index
    %c128 = arith.constant 128 : index
    %c0_41 = arith.constant 0 : index
    %101 = vector.load %arg3[%c0_40, %c128, %c0_41] : memref<2x224x128xf32, #tpu.memory_space<vmem>>, vector<1x32x64xf32>
    %102 = vector.shape_cast %101 : vector<1x32x64xf32> to vector<32x64xf32>
    %cst_42 = arith.constant dense<0.000000e+00> : vector<8x64xf32>
    %103 = tpu.matmul %100, %102, %cst_42 {dimension_numbers = #tpu.dot_dimension_numbers<[1], [0], [0], [1], [0, 0, 1, 1], [], []>} : vector<8x32xf32>, vector<32x64xf32>, vector<8x64xf32> -> vector<8x64xf32>
    %c0_43 = arith.constant 0 : index
    %c96 = arith.constant 96 : index
    %c0_44 = arith.constant 0 : index
    %104 = vector.load %arg3[%c0_43, %c96, %c0_44] : memref<2x224x128xf32, #tpu.memory_space<vmem>>, vector<1x1x64xf32>
    %105 = vector.shape_cast %104 : vector<1x1x64xf32> to vector<1x64xf32>
    %106 = vector.broadcast %105 : vector<1x64xf32> to vector<8x64xf32>
    %107 = arith.addf %103, %106 : vector<8x64xf32>
    %cst_45 = arith.constant 0.000000e+00 : f32
    %108 = vector.broadcast %cst_45 : f32 to vector<8x64xf32>
    %109 = arith.maximumf %107, %108 : vector<8x64xf32>
    %c0_46 = arith.constant 0 : index
    %c160 = arith.constant 160 : index
    %c0_47 = arith.constant 0 : index
    %110 = vector.load %arg3[%c0_46, %c160, %c0_47] : memref<2x224x128xf32, #tpu.memory_space<vmem>>, vector<1x64x32xf32>
    %111 = vector.shape_cast %110 : vector<1x64x32xf32> to vector<64x32xf32>
    %cst_48 = arith.constant dense<0.000000e+00> : vector<8x32xf32>
    %112 = tpu.matmul %109, %111, %cst_48 {dimension_numbers = #tpu.dot_dimension_numbers<[1], [0], [0], [1], [0, 0, 1, 1], [], []>} : vector<8x64xf32>, vector<64x32xf32>, vector<8x32xf32> -> vector<8x32xf32>
    %c0_49 = arith.constant 0 : index
    %c104 = arith.constant 104 : index
    %c0_50 = arith.constant 0 : index
    %113 = vector.load %arg3[%c0_49, %c104, %c0_50] : memref<2x224x128xf32, #tpu.memory_space<vmem>>, vector<1x1x32xf32>
    %114 = vector.shape_cast %113 : vector<1x1x32xf32> to vector<1x32xf32>
    %115 = vector.broadcast %114 : vector<1x32xf32> to vector<8x32xf32>
    %116 = arith.addf %112, %115 : vector<8x32xf32>
    %117 = arith.addf %100, %116 : vector<8x32xf32>
    %c0_51 = arith.constant 0 : index
    %c112 = arith.constant 112 : index
    %c0_52 = arith.constant 0 : index
    %118 = vector.load %arg3[%c0_51, %c112, %c0_52] : memref<2x224x128xf32, #tpu.memory_space<vmem>>, vector<1x1x32xf32>
    %119 = vector.shape_cast %118 : vector<1x1x32xf32> to vector<1x32xf32>
    %c0_53 = arith.constant 0 : index
    %c120 = arith.constant 120 : index
    %c0_54 = arith.constant 0 : index
    %120 = vector.load %arg3[%c0_53, %c120, %c0_54] : memref<2x224x128xf32, #tpu.memory_space<vmem>>, vector<1x1x32xf32>
    %121 = vector.shape_cast %120 : vector<1x1x32xf32> to vector<1x32xf32>
    %cst_55 = arith.constant dense<0.000000e+00> : vector<8xf32>
    %122 = vector.multi_reduction <add>, %117, %cst_55 [1] : vector<8x32xf32> to vector<8xf32>
    %123 = vector.shape_cast %122 : vector<8xf32> to vector<8x1xf32>
    %cst_56 = arith.constant 3.200000e+01 : f32
    %124 = vector.broadcast %cst_56 : f32 to vector<8x1xf32>
    %125 = arith.divf %123, %124 : vector<8x1xf32>
    %126 = vector.broadcast %125 : vector<8x1xf32> to vector<8x32xf32>
    %127 = arith.subf %117, %126 : vector<8x32xf32>
    %128 = arith.mulf %127, %127 : vector<8x32xf32>
    %cst_57 = arith.constant dense<0.000000e+00> : vector<8xf32>
    %129 = vector.multi_reduction <add>, %128, %cst_57 [1] : vector<8x32xf32> to vector<8xf32>
    %130 = vector.shape_cast %129 : vector<8xf32> to vector<8x1xf32>
    %cst_58 = arith.constant 3.200000e+01 : f32
    %131 = vector.broadcast %cst_58 : f32 to vector<8x1xf32>
    %132 = arith.divf %130, %131 : vector<8x1xf32>
    %133 = vector.broadcast %125 : vector<8x1xf32> to vector<8x32xf32>
    %134 = arith.subf %117, %133 : vector<8x32xf32>
    %cst_59 = arith.constant 9.99999974E-6 : f32
    %135 = vector.broadcast %cst_59 : f32 to vector<8x1xf32>
    %136 = arith.addf %132, %135 : vector<8x1xf32>
    %137 = math.rsqrt %136 : vector<8x1xf32>
    %138 = vector.broadcast %137 : vector<8x1xf32> to vector<8x32xf32>
    %139 = arith.mulf %134, %138 : vector<8x32xf32>
    %140 = vector.broadcast %119 : vector<1x32xf32> to vector<8x32xf32>
    %141 = arith.mulf %139, %140 : vector<8x32xf32>
    %142 = vector.broadcast %121 : vector<1x32xf32> to vector<8x32xf32>
    %143 = arith.addf %141, %142 : vector<8x32xf32>
    %c1 = arith.constant 1 : index
    %c0_60 = arith.constant 0 : index
    %c0_61 = arith.constant 0 : index
    %144 = vector.load %arg3[%c1, %c0_60, %c0_61] : memref<2x224x128xf32, #tpu.memory_space<vmem>>, vector<1x32x128xf32>
    %145 = vector.shape_cast %144 : vector<1x32x128xf32> to vector<32x128xf32>
    %cst_62 = arith.constant dense<0.000000e+00> : vector<8x128xf32>
    %146 = tpu.matmul %143, %145, %cst_62 {dimension_numbers = #tpu.dot_dimension_numbers<[1], [0], [0], [1], [0, 0, 1, 1], [], []>} : vector<8x32xf32>, vector<32x128xf32>, vector<8x128xf32> -> vector<8x128xf32>
    %c1_63 = arith.constant 1 : index
    %c32_64 = arith.constant 32 : index
    %c0_65 = arith.constant 0 : index
    %147 = vector.load %arg3[%c1_63, %c32_64, %c0_65] : memref<2x224x128xf32, #tpu.memory_space<vmem>>, vector<1x1x128xf32>
    %148 = vector.shape_cast %147 : vector<1x1x128xf32> to vector<1x128xf32>
    %149 = vector.broadcast %148 : vector<1x128xf32> to vector<8x128xf32>
    %150 = arith.addf %146, %149 : vector<8x128xf32>
    %cst_66 = arith.constant 0.000000e+00 : f32
    %151 = vector.broadcast %cst_66 : f32 to vector<8x32xf32>
    %152 = vector.extract_strided_slice %150 {offsets = [0, 0], sizes = [8, 16], strides = [1, 1]} : vector<8x128xf32> to vector<8x16xf32>
    %153 = vector.extract_strided_slice %150 {offsets = [0, 32], sizes = [8, 16], strides = [1, 1]} : vector<8x128xf32> to vector<8x16xf32>
    %154 = vector.extract_strided_slice %150 {offsets = [0, 64], sizes = [8, 16], strides = [1, 1]} : vector<8x128xf32> to vector<8x16xf32>
    %155 = vector.extract_strided_slice %150 {offsets = [0, 96], sizes = [8, 16], strides = [1, 1]} : vector<8x128xf32> to vector<8x16xf32>
    %cst_67 = arith.constant dense<0.000000e+00> : vector<8x8xf32>
    %156 = tpu.matmul %152, %153, %cst_67 {dimension_numbers = #tpu.dot_dimension_numbers<[1], [1], [0], [0], [0, 0, 1, 0], [], []>} : vector<8x16xf32>, vector<8x16xf32>, vector<8x8xf32> -> vector<8x8xf32>
    %cst_68 = arith.constant 2.500000e-01 : f32
    %157 = vector.broadcast %cst_68 : f32 to vector<8x8xf32>
    %158 = arith.mulf %156, %157 : vector<8x8xf32>
    %159 = arith.addf %158, %3 : vector<8x8xf32>
    %cst_69 = arith.constant dense<0xFF800000> : vector<8xf32>
    %160 = vector.multi_reduction <maximumf>, %159, %cst_69 [1] : vector<8x8xf32> to vector<8xf32>
    %161 = vector.shape_cast %160 : vector<8xf32> to vector<8x1xf32>
    %162 = vector.broadcast %161 : vector<8x1xf32> to vector<8x8xf32>
    %163 = arith.subf %159, %162 : vector<8x8xf32>
    %164 = math.exp %163 : vector<8x8xf32>
    %cst_70 = arith.constant dense<0.000000e+00> : vector<8xf32>
    %165 = vector.multi_reduction <add>, %164, %cst_70 [1] : vector<8x8xf32> to vector<8xf32>
    %166 = vector.shape_cast %165 : vector<8xf32> to vector<8x1xf32>
    %167 = tpu.reciprocal %166 {approx = true} : vector<8x1xf32> -> vector<8x1xf32>
    %168 = vector.broadcast %167 : vector<8x1xf32> to vector<8x8xf32>
    %169 = arith.mulf %164, %168 : vector<8x8xf32>
    %cst_71 = arith.constant dense<0.000000e+00> : vector<8x16xf32>
    %170 = tpu.matmul %169, %154, %cst_71 {dimension_numbers = #tpu.dot_dimension_numbers<[1], [0], [0], [1], [0, 0, 1, 1], [], []>} : vector<8x8xf32>, vector<8x16xf32>, vector<8x16xf32> -> vector<8x16xf32>
    %171 = arith.negf %155 : vector<8x16xf32>
    %172 = math.exp %171 : vector<8x16xf32>
    %cst_72 = arith.constant 1.000000e+00 : f32
    %173 = vector.broadcast %cst_72 : f32 to vector<8x16xf32>
    %174 = arith.addf %173, %172 : vector<8x16xf32>
    %175 = arith.divf %173, %174 : vector<8x16xf32>
    %176 = arith.mulf %170, %175 : vector<8x16xf32>
    %c1_73 = arith.constant 1 : index
    %c40_74 = arith.constant 40 : index
    %c0_75 = arith.constant 0 : index
    %177 = vector.load %arg3[%c1_73, %c40_74, %c0_75] : memref<2x224x128xf32, #tpu.memory_space<vmem>>, vector<1x16x32xf32>
    %178 = vector.shape_cast %177 : vector<1x16x32xf32> to vector<16x32xf32>
    %cst_76 = arith.constant dense<0.000000e+00> : vector<8x32xf32>
    %179 = tpu.matmul %176, %178, %cst_76 {dimension_numbers = #tpu.dot_dimension_numbers<[1], [0], [0], [1], [0, 0, 1, 1], [], []>} : vector<8x16xf32>, vector<16x32xf32>, vector<8x32xf32> -> vector<8x32xf32>
    %180 = arith.addf %151, %179 : vector<8x32xf32>
    %181 = vector.extract_strided_slice %150 {offsets = [0, 16], sizes = [8, 16], strides = [1, 1]} : vector<8x128xf32> to vector<8x16xf32>
    %182 = vector.extract_strided_slice %150 {offsets = [0, 48], sizes = [8, 16], strides = [1, 1]} : vector<8x128xf32> to vector<8x16xf32>
    %183 = vector.extract_strided_slice %150 {offsets = [0, 80], sizes = [8, 16], strides = [1, 1]} : vector<8x128xf32> to vector<8x16xf32>
    %184 = vector.extract_strided_slice %150 {offsets = [0, 112], sizes = [8, 16], strides = [1, 1]} : vector<8x128xf32> to vector<8x16xf32>
    %cst_77 = arith.constant dense<0.000000e+00> : vector<8x8xf32>
    %185 = tpu.matmul %181, %182, %cst_77 {dimension_numbers = #tpu.dot_dimension_numbers<[1], [1], [0], [0], [0, 0, 1, 0], [], []>} : vector<8x16xf32>, vector<8x16xf32>, vector<8x8xf32> -> vector<8x8xf32>
    %cst_78 = arith.constant 2.500000e-01 : f32
    %186 = vector.broadcast %cst_78 : f32 to vector<8x8xf32>
    %187 = arith.mulf %185, %186 : vector<8x8xf32>
    %188 = arith.addf %187, %3 : vector<8x8xf32>
    %cst_79 = arith.constant dense<0xFF800000> : vector<8xf32>
    %189 = vector.multi_reduction <maximumf>, %188, %cst_79 [1] : vector<8x8xf32> to vector<8xf32>
    %190 = vector.shape_cast %189 : vector<8xf32> to vector<8x1xf32>
    %191 = vector.broadcast %190 : vector<8x1xf32> to vector<8x8xf32>
    %192 = arith.subf %188, %191 : vector<8x8xf32>
    %193 = math.exp %192 : vector<8x8xf32>
    %cst_80 = arith.constant dense<0.000000e+00> : vector<8xf32>
    %194 = vector.multi_reduction <add>, %193, %cst_80 [1] : vector<8x8xf32> to vector<8xf32>
    %195 = vector.shape_cast %194 : vector<8xf32> to vector<8x1xf32>
    %196 = tpu.reciprocal %195 {approx = true} : vector<8x1xf32> -> vector<8x1xf32>
    %197 = vector.broadcast %196 : vector<8x1xf32> to vector<8x8xf32>
    %198 = arith.mulf %193, %197 : vector<8x8xf32>
    %cst_81 = arith.constant dense<0.000000e+00> : vector<8x16xf32>
    %199 = tpu.matmul %198, %183, %cst_81 {dimension_numbers = #tpu.dot_dimension_numbers<[1], [0], [0], [1], [0, 0, 1, 1], [], []>} : vector<8x8xf32>, vector<8x16xf32>, vector<8x16xf32> -> vector<8x16xf32>
    %200 = arith.negf %184 : vector<8x16xf32>
    %201 = math.exp %200 : vector<8x16xf32>
    %cst_82 = arith.constant 1.000000e+00 : f32
    %202 = vector.broadcast %cst_82 : f32 to vector<8x16xf32>
    %203 = arith.addf %202, %201 : vector<8x16xf32>
    %204 = arith.divf %202, %203 : vector<8x16xf32>
    %205 = arith.mulf %199, %204 : vector<8x16xf32>
    %c1_83 = arith.constant 1 : index
    %c56_84 = arith.constant 56 : index
    %c0_85 = arith.constant 0 : index
    %206 = vector.load %arg3[%c1_83, %c56_84, %c0_85] : memref<2x224x128xf32, #tpu.memory_space<vmem>>, vector<1x16x32xf32>
    %207 = vector.shape_cast %206 : vector<1x16x32xf32> to vector<16x32xf32>
    %cst_86 = arith.constant dense<0.000000e+00> : vector<8x32xf32>
    %208 = tpu.matmul %205, %207, %cst_86 {dimension_numbers = #tpu.dot_dimension_numbers<[1], [0], [0], [1], [0, 0, 1, 1], [], []>} : vector<8x16xf32>, vector<16x32xf32>, vector<8x32xf32> -> vector<8x32xf32>
    %209 = arith.addf %180, %208 : vector<8x32xf32>
    %c1_87 = arith.constant 1 : index
    %c72_88 = arith.constant 72 : index
    %c0_89 = arith.constant 0 : index
    %210 = vector.load %arg3[%c1_87, %c72_88, %c0_89] : memref<2x224x128xf32, #tpu.memory_space<vmem>>, vector<1x1x32xf32>
    %211 = vector.shape_cast %210 : vector<1x1x32xf32> to vector<1x32xf32>
    %212 = vector.broadcast %211 : vector<1x32xf32> to vector<8x32xf32>
    %213 = arith.addf %209, %212 : vector<8x32xf32>
    %214 = arith.addf %143, %213 : vector<8x32xf32>
    %c1_90 = arith.constant 1 : index
    %c80_91 = arith.constant 80 : index
    %c0_92 = arith.constant 0 : index
    %215 = vector.load %arg3[%c1_90, %c80_91, %c0_92] : memref<2x224x128xf32, #tpu.memory_space<vmem>>, vector<1x1x32xf32>
    %216 = vector.shape_cast %215 : vector<1x1x32xf32> to vector<1x32xf32>
    %c1_93 = arith.constant 1 : index
    %c88_94 = arith.constant 88 : index
    %c0_95 = arith.constant 0 : index
    %217 = vector.load %arg3[%c1_93, %c88_94, %c0_95] : memref<2x224x128xf32, #tpu.memory_space<vmem>>, vector<1x1x32xf32>
    %218 = vector.shape_cast %217 : vector<1x1x32xf32> to vector<1x32xf32>
    %cst_96 = arith.constant dense<0.000000e+00> : vector<8xf32>
    %219 = vector.multi_reduction <add>, %214, %cst_96 [1] : vector<8x32xf32> to vector<8xf32>
    %220 = vector.shape_cast %219 : vector<8xf32> to vector<8x1xf32>
    %cst_97 = arith.constant 3.200000e+01 : f32
    %221 = vector.broadcast %cst_97 : f32 to vector<8x1xf32>
    %222 = arith.divf %220, %221 : vector<8x1xf32>
    %223 = vector.broadcast %222 : vector<8x1xf32> to vector<8x32xf32>
    %224 = arith.subf %214, %223 : vector<8x32xf32>
    %225 = arith.mulf %224, %224 : vector<8x32xf32>
    %cst_98 = arith.constant dense<0.000000e+00> : vector<8xf32>
    %226 = vector.multi_reduction <add>, %225, %cst_98 [1] : vector<8x32xf32> to vector<8xf32>
    %227 = vector.shape_cast %226 : vector<8xf32> to vector<8x1xf32>
    %cst_99 = arith.constant 3.200000e+01 : f32
    %228 = vector.broadcast %cst_99 : f32 to vector<8x1xf32>
    %229 = arith.divf %227, %228 : vector<8x1xf32>
    %230 = vector.broadcast %222 : vector<8x1xf32> to vector<8x32xf32>
    %231 = arith.subf %214, %230 : vector<8x32xf32>
    %cst_100 = arith.constant 9.99999974E-6 : f32
    %232 = vector.broadcast %cst_100 : f32 to vector<8x1xf32>
    %233 = arith.addf %229, %232 : vector<8x1xf32>
    %234 = math.rsqrt %233 : vector<8x1xf32>
    %235 = vector.broadcast %234 : vector<8x1xf32> to vector<8x32xf32>
    %236 = arith.mulf %231, %235 : vector<8x32xf32>
    %237 = vector.broadcast %216 : vector<1x32xf32> to vector<8x32xf32>
    %238 = arith.mulf %236, %237 : vector<8x32xf32>
    %239 = vector.broadcast %218 : vector<1x32xf32> to vector<8x32xf32>
    %240 = arith.addf %238, %239 : vector<8x32xf32>
    %c1_101 = arith.constant 1 : index
    %c128_102 = arith.constant 128 : index
    %c0_103 = arith.constant 0 : index
    %241 = vector.load %arg3[%c1_101, %c128_102, %c0_103] : memref<2x224x128xf32, #tpu.memory_space<vmem>>, vector<1x32x64xf32>
    %242 = vector.shape_cast %241 : vector<1x32x64xf32> to vector<32x64xf32>
    %cst_104 = arith.constant dense<0.000000e+00> : vector<8x64xf32>
    %243 = tpu.matmul %240, %242, %cst_104 {dimension_numbers = #tpu.dot_dimension_numbers<[1], [0], [0], [1], [0, 0, 1, 1], [], []>} : vector<8x32xf32>, vector<32x64xf32>, vector<8x64xf32> -> vector<8x64xf32>
    %c1_105 = arith.constant 1 : index
    %c96_106 = arith.constant 96 : index
    %c0_107 = arith.constant 0 : index
    %244 = vector.load %arg3[%c1_105, %c96_106, %c0_107] : memref<2x224x128xf32, #tpu.memory_space<vmem>>, vector<1x1x64xf32>
    %245 = vector.shape_cast %244 : vector<1x1x64xf32> to vector<1x64xf32>
    %246 = vector.broadcast %245 : vector<1x64xf32> to vector<8x64xf32>
    %247 = arith.addf %243, %246 : vector<8x64xf32>
    %cst_108 = arith.constant 0.000000e+00 : f32
    %248 = vector.broadcast %cst_108 : f32 to vector<8x64xf32>
    %249 = arith.maximumf %247, %248 : vector<8x64xf32>
    %c1_109 = arith.constant 1 : index
    %c160_110 = arith.constant 160 : index
    %c0_111 = arith.constant 0 : index
    %250 = vector.load %arg3[%c1_109, %c160_110, %c0_111] : memref<2x224x128xf32, #tpu.memory_space<vmem>>, vector<1x64x32xf32>
    %251 = vector.shape_cast %250 : vector<1x64x32xf32> to vector<64x32xf32>
    %cst_112 = arith.constant dense<0.000000e+00> : vector<8x32xf32>
    %252 = tpu.matmul %249, %251, %cst_112 {dimension_numbers = #tpu.dot_dimension_numbers<[1], [0], [0], [1], [0, 0, 1, 1], [], []>} : vector<8x64xf32>, vector<64x32xf32>, vector<8x32xf32> -> vector<8x32xf32>
    %c1_113 = arith.constant 1 : index
    %c104_114 = arith.constant 104 : index
    %c0_115 = arith.constant 0 : index
    %253 = vector.load %arg3[%c1_113, %c104_114, %c0_115] : memref<2x224x128xf32, #tpu.memory_space<vmem>>, vector<1x1x32xf32>
    %254 = vector.shape_cast %253 : vector<1x1x32xf32> to vector<1x32xf32>
    %255 = vector.broadcast %254 : vector<1x32xf32> to vector<8x32xf32>
    %256 = arith.addf %252, %255 : vector<8x32xf32>
    %257 = arith.addf %240, %256 : vector<8x32xf32>
    %c1_116 = arith.constant 1 : index
    %c112_117 = arith.constant 112 : index
    %c0_118 = arith.constant 0 : index
    %258 = vector.load %arg3[%c1_116, %c112_117, %c0_118] : memref<2x224x128xf32, #tpu.memory_space<vmem>>, vector<1x1x32xf32>
    %259 = vector.shape_cast %258 : vector<1x1x32xf32> to vector<1x32xf32>
    %c1_119 = arith.constant 1 : index
    %c120_120 = arith.constant 120 : index
    %c0_121 = arith.constant 0 : index
    %260 = vector.load %arg3[%c1_119, %c120_120, %c0_121] : memref<2x224x128xf32, #tpu.memory_space<vmem>>, vector<1x1x32xf32>
    %261 = vector.shape_cast %260 : vector<1x1x32xf32> to vector<1x32xf32>
    %cst_122 = arith.constant dense<0.000000e+00> : vector<8xf32>
    %262 = vector.multi_reduction <add>, %257, %cst_122 [1] : vector<8x32xf32> to vector<8xf32>
    %263 = vector.shape_cast %262 : vector<8xf32> to vector<8x1xf32>
    %cst_123 = arith.constant 3.200000e+01 : f32
    %264 = vector.broadcast %cst_123 : f32 to vector<8x1xf32>
    %265 = arith.divf %263, %264 : vector<8x1xf32>
    %266 = vector.broadcast %265 : vector<8x1xf32> to vector<8x32xf32>
    %267 = arith.subf %257, %266 : vector<8x32xf32>
    %268 = arith.mulf %267, %267 : vector<8x32xf32>
    %cst_124 = arith.constant dense<0.000000e+00> : vector<8xf32>
    %269 = vector.multi_reduction <add>, %268, %cst_124 [1] : vector<8x32xf32> to vector<8xf32>
    %270 = vector.shape_cast %269 : vector<8xf32> to vector<8x1xf32>
    %cst_125 = arith.constant 3.200000e+01 : f32
    %271 = vector.broadcast %cst_125 : f32 to vector<8x1xf32>
    %272 = arith.divf %270, %271 : vector<8x1xf32>
    %273 = vector.broadcast %265 : vector<8x1xf32> to vector<8x32xf32>
    %274 = arith.subf %257, %273 : vector<8x32xf32>
    %cst_126 = arith.constant 9.99999974E-6 : f32
    %275 = vector.broadcast %cst_126 : f32 to vector<8x1xf32>
    %276 = arith.addf %272, %275 : vector<8x1xf32>
    %277 = math.rsqrt %276 : vector<8x1xf32>
    %278 = vector.broadcast %277 : vector<8x1xf32> to vector<8x32xf32>
    %279 = arith.mulf %274, %278 : vector<8x32xf32>
    %280 = vector.broadcast %259 : vector<1x32xf32> to vector<8x32xf32>
    %281 = arith.mulf %279, %280 : vector<8x32xf32>
    %282 = vector.broadcast %261 : vector<1x32xf32> to vector<8x32xf32>
    %283 = arith.addf %281, %282 : vector<8x32xf32>
    %c0_127 = arith.constant 0 : index
    %c0_128 = arith.constant 0 : index
    %c0_129 = arith.constant 0 : index
    %284 = vector.load %arg4[%c0_127, %c0_128, %c0_129] : memref<1x8x32xf32, #tpu.memory_space<vmem>>, vector<1x8x32xf32>
    %285 = vector.shape_cast %284 : vector<1x8x32xf32> to vector<8x32xf32>
    %286 = vector.shape_cast %283 : vector<8x32xf32> to vector<1x8x32xf32>
    tpu.vector_store %arg4[%c0_127, %c0_128, %c0_129], %286 {strides = array<i32>} : memref<1x8x32xf32, #tpu.memory_space<vmem>>, vector<1x8x32xf32>,
    return
  }
  func.func @transform_0(%arg0: i32) -> (i32, i32, i32) {
    %c0_i32 = arith.constant 0 : i32
    %c0_i32_0 = arith.constant 0 : i32
    %c0_i32_1 = arith.constant 0 : i32
    return %arg0, %c0_i32, %c0_i32_0 : i32, i32, i32
  }
  func.func @transform_1(%arg0: i32) -> (i32, i32, i32) {
    %c0_i32 = arith.constant 0 : i32
    %c0_i32_0 = arith.constant 0 : i32
    %c0_i32_1 = arith.constant 0 : i32
    return %arg0, %c0_i32, %c0_i32_0 : i32, i32, i32
  }
  func.func @transform_2(%arg0: i32) -> (i32, i32, i32) {
    %c0_i32 = arith.constant 0 : i32
    %c0_i32_0 = arith.constant 0 : i32
    %c0_i32_1 = arith.constant 0 : i32
    %c0_i32_2 = arith.constant 0 : i32
    return %c0_i32, %c0_i32_0, %c0_i32_1 : i32, i32, i32
  }
  func.func @transform_3(%arg0: i32) -> (i32, i32, i32) {
    %c0_i32 = arith.constant 0 : i32
    %c0_i32_0 = arith.constant 0 : i32
    %c0_i32_1 = arith.constant 0 : i32
    return %arg0, %c0_i32, %c0_i32_0 : i32, i32, i32
  }
}

</mosaic_0001>

<llo_original>
// kernel: tpu_custom_call.1
$region0: #{tpu_custom_call.1}
  #allocation0 [shape = 'u32[]', space=smem, size = 0x4, offset = 0x4, fixed_abs, tag = 'smem constant byte address 0x4 - core index']
  #allocation1 [shape = 'u32[72,128]{1,0:T(1,128)}', space=vmem, size = 0x9000, scoped, tag = 'internal scratch']
  %s0 = inlined_call_operand.hbm [shape: f32[2,8,32], index: 0, kind: input, shape index: {}]
  %s1 = inlined_call_operand.hbm [shape: f32[2,8,8], index: 1, kind: input, shape index: {}]
  %s2 = inlined_call_operand.hbm [shape: f32[2,224,128], index: 2, kind: input, shape index: {}]
  %s3 = inlined_call_operand.hbm [shape: f32[2,8,32], index: 3, kind: output, shape index: {}]
  %s4 = sld [smem:[#allocation0]]
  $region57: #{tpu_custom_call.1} parent=0
    _
  %s6 = ssub.s32 1, %s4
  %s7 = scalar_select 0, %s6, %s4
  $region1: #{tpu_custom_call.1} parent=0
    #allocation2 [shape = 'u8[8192]{0}', space=vmem, size = 0x2000, scoped, tag = 'input window, operand 0']
    #allocation3 [shape = 's32[2]{0}', space=sflag, size = 0x8, scoped, tag = 'scoped memory for tpu_custom_call.1']
    #allocation4 [shape = 's32[2]{0}', space=sflag, size = 0x8, scoped, tag = 'scoped memory for tpu_custom_call.1']
    #allocation5 [shape = 'u8[8192]{0}', space=vmem, size = 0x2000, scoped, tag = 'input window, operand 1']
    #allocation6 [shape = 's32[2]{0}', space=sflag, size = 0x8, scoped, tag = 'scoped memory for tpu_custom_call.1']
    #allocation7 [shape = 'u8[229376]{0}', space=vmem, size = 0x38000, scoped, tag = 'input window, operand 2, single buffered']
    #allocation8 [shape = 'u8[8192]{0}', space=vmem, size = 0x2000, scoped, tag = 'output window, operand 0']
    %8 = vsyncpa [#allocation3], 0
    %s9 = scalar_lea.sflag [#allocation3], 1
    %10 = vsyncpa %s9, 0
    %11 = vsyncpa [#allocation6], 0
    %s12 = scalar_lea.sflag [#allocation6], 1
    %13 = vsyncpa %s12, 0
    %14 = vsyncpa [#allocation4], 0
    %s15 = scalar_lea.sflag [#allocation4], 1
    %16 = vsyncpa %s15, 0
    loop: start=0, step=1, limit=4
    $region2: #{tpu_custom_call.1} parent=1 // loop_pre_header
      _
    $region3: #{tpu_custom_call.1} parent=1 // loop_header
      %s18 = sphi 0, %s22
      %p19 = scmp.ge.s32.totalorder %s18, 4
      %s28 = sphi 0, %s30
      %s31 = sphi 0, %s28
      %s32 = sphi 0, %s31
      %s48 = sphi 0, %s32
      %s54 = sphi 0, %s56
      %s57 = sphi 0, %s54
      %s58 = sphi 0, %s57
      %s74 = sphi 0, %s58
      %s78 = sphi 0, %s78
      %s80 = sphi 0, %s78
      %s81 = sphi 0, %s80
      %s95 = sphi 0, %s81
      %s101 = sphi 0, %s103
      %s104 = sphi 0, %s101
      %s105 = sphi 0, %s104
      %s121 = sphi 0, %s105
    $region4: #{tpu_custom_call.1} parent=1 // loop_header_branch
      %21 = sbr.rel (%p19) target = $region8
    $region5: #{tpu_custom_call.1} parent=1 // loop_body
      %s23 = ssub.s32 %s18, 1
      %s24 = ssub.s32 %s18, 2
      %s25 = sadd.s32 %s18, 1
      %s26 = ssub.s32 %s18, %s25
      %p27 = scmp.eq.s32.totalorder %s26, 0
      %s29 = sadd.s32 %s28, 1
      %s30 = scalar_select %p27, %s28, %s29
      %p33 = pneg %p27
      %p34 = scmp.eq.s32.totalorder %s18, 1
      %p35 = por %p33, %p34
      %p36 = scmp.ne.s32.totalorder %s28, %s31
      %p37 = scmp.eq.s32.totalorder %s18, 0
      %p38 = por %p36, %p37
      %p39 = scmp.ne.s32.totalorder %s28, %s31
      %p40 = scmp.eq.s32.totalorder %s23, 1
      %p41 = por %p39, %p40
      %p42 = scmp.ne.s32.totalorder %s31, %s32
      %p43 = scmp.eq.s32.totalorder %s23, 0
      %p44 = por %p42, %p43
      %p45 = scmp.ne.s32.totalorder %s31, %s32
      %p46 = scmp.eq.s32.totalorder %s24, 1
      %p47 = por %p45, %p46
      %p49 = scmp.ne.s32.totalorder %s32, %s48
      %p50 = scmp.eq.s32.totalorder %s24, 0
      %p51 = por %p49, %p50
      %s52 = ssub.s32 %s18, %s25
      %p53 = scmp.eq.s32.totalorder %s52, 0
      %s55 = sadd.s32 %s54, 1
      %s56 = scalar_select %p53, %s54, %s55
      %p59 = pneg %p53
      %p60 = scmp.eq.s32.totalorder %s18, 1
      %p61 = por %p59, %p60
      %p62 = scmp.ne.s32.totalorder %s54, %s57
      %p63 = scmp.eq.s32.totalorder %s18, 0
      %p64 = por %p62, %p63
      %p65 = scmp.ne.s32.totalorder %s54, %s57
      %p66 = scmp.eq.s32.totalorder %s23, 1
      %p67 = por %p65, %p66
      %p68 = scmp.ne.s32.totalorder %s57, %s58
      %p69 = scmp.eq.s32.totalorder %s23, 0
      %p70 = por %p68, %p69
      %p71 = scmp.ne.s32.totalorder %s57, %s58
      %p72 = scmp.eq.s32.totalorder %s24, 1
      %p73 = por %p71, %p72
      %p75 = scmp.ne.s32.totalorder %s58, %s74
      %p76 = scmp.eq.s32.totalorder %s24, 0
      %p77 = por %p75, %p76
      %s79 = sadd.s32 %s78, 1
      %p82 = scmp.eq.s32.totalorder %s18, 1
      %p83 = scmp.ne.s32.totalorder %s78, %s80
      %p84 = scmp.eq.s32.totalorder %s18, 0
      %p85 = por %p83, %p84
      %p86 = scmp.ne.s32.totalorder %s78, %s80
      %p87 = scmp.eq.s32.totalorder %s23, 1
      %p88 = por %p86, %p87
      %p89 = scmp.ne.s32.totalorder %s80, %s81
      %p90 = scmp.eq.s32.totalorder %s23, 0
      %p91 = por %p89, %p90
      %p92 = scmp.ne.s32.totalorder %s80, %s81
      %p93 = scmp.eq.s32.totalorder %s24, 1
      %p94 = por %p92, %p93
      %p96 = scmp.ne.s32.totalorder %s81, %s95
      %p97 = scmp.eq.s32.totalorder %s24, 0
      %p98 = por %p96, %p97
      %s99 = ssub.s32 %s18, %s25
      %p100 = scmp.eq.s32.totalorder %s99, 0
      %s102 = sadd.s32 %s101, 1
      %s103 = scalar_select %p100, %s101, %s102
      %p106 = pneg %p100
      %p107 = scmp.eq.s32.totalorder %s18, 1
      %p108 = por %p106, %p107
      %p109 = scmp.ne.s32.totalorder %s101, %s104
      %p110 = scmp.eq.s32.totalorder %s18, 0
      %p111 = por %p109, %p110
      %p112 = scmp.ne.s32.totalorder %s101, %s104
      %p113 = scmp.eq.s32.totalorder %s23, 1
      %p114 = por %p112, %p113
      %p115 = scmp.ne.s32.totalorder %s104, %s105
      %p116 = scmp.eq.s32.totalorder %s23, 0
      %p117 = por %p115, %p116
      %p118 = scmp.ne.s32.totalorder %s104, %s105
      %p119 = scmp.eq.s32.totalorder %s24, 1
      %p120 = por %p118, %p119
      %p122 = scmp.ne.s32.totalorder %s105, %s121
      %p123 = scmp.eq.s32.totalorder %s24, 0
      %p124 = por %p122, %p123
      %p125 = scmp.le.s32.totalorder 1, %s18
      %p126 = scmp.lt.s32.totalorder %s18, 3
      %p127 = pnand %p125, %p126
      %p128 = pneg %p127
      // Predicated region
      $region9: #{tpu_custom_call.1} parent=5 // pred_check
        _
      $region10: #{tpu_custom_call.1} parent=5 // pred_check_branch
        %130 = sbr.rel (%p127) target = $region12
      $region11: #{tpu_custom_call.1} parent=5 // pred_region
        %s131 = ssub.s32 %s18, 1
        // Predicated region
        $region13: #{tpu_custom_call.1} parent=11 // pred_check
          %p132 = pneg %p91
        $region14: #{tpu_custom_call.1} parent=11 // pred_check_branch
          %134 = sbr.rel (%p132) target = $region16
        $region15: #{tpu_custom_call.1} parent=11 // pred_region
          %136 = vsyncadd [#allocation6], 0
          %s137 = sshll.u32 %s2, 4
          %s138 = int_to_ptr.hbm [resolvable:$true] %s137
          %s139 = sshll.u32 [#allocation7], 4
          %s140 = int_to_ptr.vmem [resolvable:$true] %s139
          %145 = dma.hbm_to_vmem [thread:$0]  %s138, 7168, %s140, [#allocation6], 128, 128, 8
        $region16: #{tpu_custom_call.1} parent=11 // pred_fallthru
          _
      $region12: #{tpu_custom_call.1} parent=5 // pred_fallthru
        _
      %p146 = scmp.lt.s32.totalorder %s18, 2
      // Predicated region
      $region17: #{tpu_custom_call.1} parent=5 // pred_check
        %p147 = pneg %p146
      $region18: #{tpu_custom_call.1} parent=5 // pred_check_branch
        %149 = sbr.rel (%p147) target = $region20
      $region19: #{tpu_custom_call.1} parent=5 // pred_region
        // Predicated region
        $region21: #{tpu_custom_call.1} parent=19 // pred_check
          %p150 = pneg %p38
        $region22: #{tpu_custom_call.1} parent=19 // pred_check_branch
          %152 = sbr.rel (%p150) target = $region24
        $region23: #{tpu_custom_call.1} parent=19 // pred_region
          %s153 = sand.u32 %s28, 1
          %s154 = scalar_lea.sflag [#allocation3], %s153
          %s155 = sand.u32 %s28, 1
          %s156 = smul.addr %s155, 8
          %s157 = scalar_lea.vmem [#allocation2], %s156
          %159 = vsyncadd %s154, 0
          %s160 = smul.addr %s18, 8
          %s161 = scalar_lea.hbm %s0, %s160
          %s163 = sshll.u32 %s161, 4
          %s164 = int_to_ptr.hbm [resolvable:$true] %s163
          %s165 = sshll.u32 %s157, 4
          %s166 = int_to_ptr.vmem [resolvable:$true] %s165
          %168 = dma.hbm_to_vmem [thread:$0]  %s164, 128, %s166, %s154
        $region24: #{tpu_custom_call.1} parent=19 // pred_fallthru
          _
        // Predicated region
        $region25: #{tpu_custom_call.1} parent=19 // pred_check
          %p169 = pneg %p64
        $region26: #{tpu_custom_call.1} parent=19 // pred_check_branch
          %171 = sbr.rel (%p169) target = $region28
        $region27: #{tpu_custom_call.1} parent=19 // pred_region
          %s172 = sand.u32 %s18, 1
          %s173 = scalar_lea.sflag [#allocation6], %s172
          %s174 = sand.u32 %s54, 1
          %s175 = smul.addr %s174, 8
          %s176 = scalar_lea.vmem [#allocation5], %s175
          %178 = vsyncadd %s173, 0
          %s179 = smul.addr %s18, 8
          %s180 = scalar_lea.hbm %s1, %s179
          %s182 = sshll.u32 %s180, 4
          %s183 = int_to_ptr.hbm [resolvable:$true] %s182
          %s184 = sshll.u32 %s176, 4
          %s185 = int_to_ptr.vmem [resolvable:$true] %s184
          %187 = dma.hbm_to_vmem [thread:$0]  %s183, 128, %s185, %s173
        $region28: #{tpu_custom_call.1} parent=19 // pred_fallthru
          _
      $region20: #{tpu_custom_call.1} parent=5 // pred_fallthru
        _
      %p188 = scmp.le.s32.totalorder 1, %s18
      %p189 = scmp.lt.s32.totalorder %s18, 3
      %p190 = pnand %p188, %p189
      %p191 = pneg %p190
      // Predicated region
      $region29: #{tpu_custom_call.1} parent=5 // pred_check
        _
      $region30: #{tpu_custom_call.1} parent=5 // pred_check_branch
        %193 = sbr.rel (%p190) target = $region32
      $region31: #{tpu_custom_call.1} parent=5 // pred_region
        %s194 = ssub.s32 %s18, 1
        %s195 = sand.u32 %s31, 1
        %s196 = scalar_lea.sflag [#allocation3], %s195
        %s197 = sand.u32 %s31, 1
        %s198 = smul.addr %s197, 8
        %s199 = scalar_lea.vmem [#allocation2], %s198
        // Predicated region
        $region33: #{tpu_custom_call.1} parent=31 // pred_check
          %p200 = pneg %p44
        $region34: #{tpu_custom_call.1} parent=31 // pred_check_branch
          %202 = sbr.rel (%p200) target = $region36
        $region35: #{tpu_custom_call.1} parent=31 // pred_region
          %204 = dma.done %s196, 128
        $region36: #{tpu_custom_call.1} parent=31 // pred_fallthru
          _
        %s205 = sand.u32 %s23, 1
        %s206 = scalar_lea.sflag [#allocation6], %s205
        %s207 = sand.u32 %s57, 1
        %s208 = smul.addr %s207, 8
        %s209 = scalar_lea.vmem [#allocation5], %s208
        // Predicated region
        $region37: #{tpu_custom_call.1} parent=31 // pred_check
          %p210 = pneg %p70
        $region38: #{tpu_custom_call.1} parent=31 // pred_check_branch
          %212 = sbr.rel (%p210) target = $region40
        $region39: #{tpu_custom_call.1} parent=31 // pred_region
          %214 = dma.done %s206, 128
        $region40: #{tpu_custom_call.1} parent=31 // pred_fallthru
          _
        // Predicated region
        $region41: #{tpu_custom_call.1} parent=31 // pred_check
          %p215 = pneg %p91
        $region42: #{tpu_custom_call.1} parent=31 // pred_check_branch
          %217 = sbr.rel (%p215) target = $region44
        $region43: #{tpu_custom_call.1} parent=31 // pred_region
          %219 = dma.done [#allocation6], 7168
        $region44: #{tpu_custom_call.1} parent=31 // pred_fallthru
          _
        %s220 = sand.u32 %s31, 1
        %s221 = scalar_lea.sflag [#allocation3], %s220
        %s222 = sand.u32 %s31, 1
        %s223 = smul.addr %s222, 8
        %s224 = scalar_lea.vmem [#allocation2], %s223
        %p225 = pneg %p44
        %p226 = pneg %p41
        %s227 = sand.u32 %s23, 1
        %s228 = scalar_lea.sflag [#allocation6], %s227
        %s229 = sand.u32 %s57, 1
        %s230 = smul.addr %s229, 8
        %s231 = scalar_lea.vmem [#allocation5], %s230
        %p232 = pneg %p70
        %p233 = pneg %p67
        %p234 = pneg %p91
        %p235 = pneg %p88
        %p236 = pneg %p117
        %p237 = pneg %p114
        %s238 = sand.u32 %s104, 1
        %s239 = scalar_lea.sflag [#allocation4], %s238
        %s240 = sand.u32 %s104, 1
        %s241 = smul.addr %s240, 8
        %s242 = scalar_lea.vmem [#allocation8], %s241
        %v243 = vld [vmem:[%s199] sm:$0xff]
        %v244 = vld [vmem:[%s209] sm:$0xff]
        %v245 = vld [vmem:[#allocation7] sm:$0xff]
        %v246 = vld [vmem:[#allocation7 + $0x8] sm:$0xff]
        %v247 = vld [vmem:[#allocation7 + $0x10] sm:$0xff]
        %v248 = vld [vmem:[#allocation7 + $0x18] sm:$0xff]
        %v249 = vld [vmem:[#allocation7 + $0x20] sm:$0x1]
        %v250 = vperm.slane %v249, 0
        %vm251 = vcmask 261120
        %v253 = vsel %vm251, %v243, 0
        %255 = vmatpush.msra.mxu0 0.0
        %256 = vmatpush.msra.mxu0 0.0
        %257 = vmatpush.msra.mxu0 0.0
        %258 = vmatpush.msra.mxu0 0.0
        %259 = vmatpush.msra.mxu0 0.0
        %260 = vmatpush.msra.mxu0 0.0
        %261 = vmatpush.msra.mxu0 0.0
        %262 = vmatpush.msra.mxu0 0.0
        %263 = vmatpush.msra.mxu0 0.0
        %264 = vmatpush.msra.mxu0 0.0
        %265 = vmatpush.msra.mxu0 0.0
        %266 = vmatpush.msra.mxu0 0.0
        %267 = vmatpush.msra.mxu0 %v248
        %268 = vmatpush.msra.mxu0 %v247
        %269 = vmatpush.msra.mxu0 %v246
        %270 = vmatpush.msra.mxu0 %v245
        %271 = vmatmul.f32.gmra.mxu0 %v253
        %v272 = vpop.f32.mrf.mxu0
        %v273 = vadd.f32 %v250, %v272
        %274 = vdwg.mxu0
        %276 = vrot.lane.b32.xlu0 %v273, 96
        %v277 = vpop.permute.xlu0 %276
        %vm278 = vcmask 130048
        %v279 = vsel %vm278, %v273, 0
        %v281 = vsel %vm278, %v277, 0
        %283 = vmatpush.xpose.msra.mxu0 0.0
        %284 = vmatpush.xpose.msra.mxu0 0.0
        %285 = vmatpush.xpose.msra.mxu0 0.0
        %286 = vmatpush.xpose.msra.mxu0 0.0
        %287 = vmatpush.xpose.msra.mxu0 0.0
        %288 = vmatpush.xpose.msra.mxu0 0.0
        %289 = vmatpush.xpose.msra.mxu0 0.0
        %290 = vmatpush.xpose.msra.mxu0 0.0
        %291 = vmatpush.xpose.msra.mxu0 0.0
        %292 = vmatpush.xpose.msra.mxu0 0.0
        %293 = vmatpush.xpose.msra.mxu0 0.0
        %294 = vmatpush.xpose.msra.mxu0 0.0
        %295 = vmatpush.xpose.msra.mxu0 0.0
        %296 = vmatpush.xpose.msra.mxu0 0.0
        %297 = vmatpush.xpose.msra.mxu0 0.0
        %298 = vmatpush.xpose.msra.mxu0 %v281
        %299 = vmatmul.f32.gmra.mxu0 %v279
        %v300 = vpop.f32.mrf.mxu0
        %v301 = vadd.f32 0.0, %v300
        %302 = vdwg.mxu0
        %v303 = vmul.f32 %v301, 0.25
        %v304 = vadd.f32 %v303, %v244
        %vm305 = vcmask 64512
        %v306 = vsel %vm305, %v304, -inf
        %307 = vmax.xlane.f32.xlu0 %v306
        %v308 = vpop.xlane.xlu0 %307
        %v309 = vsub.f32 %v304, %v308
        %v310 = vmul.f32 %v309, 1.442695
        %v311 = vpow.pop %v310
        %v312 = vsel %vm305, %v311, 0.0
        %313 = vadd.xlane.f32.xlu0 %v312
        %v314 = vpop.xlane.xlu0 %313
        %v315 = vrcp.pop %v314
        %v316 = vmul.f32 %v311, %v315
        %317 = vrot.lane.b32.xlu0 %v273, 64
        %v318 = vpop.permute.xlu0 %317
        %v321 = vsel %vm305, %v316, 0
        %323 = vmatpush.msra.mxu0 0.0
        %324 = vmatpush.msra.mxu0 0.0
        %325 = vmatpush.msra.mxu0 0.0
        %326 = vmatpush.msra.mxu0 0.0
        %327 = vmatpush.msra.mxu0 0.0
        %328 = vmatpush.msra.mxu0 0.0
        %329 = vmatpush.msra.mxu0 0.0
        %330 = vmatpush.msra.mxu0 0.0
        %331 = vmatpush.msra.mxu0 0.0
        %332 = vmatpush.msra.mxu0 0.0
        %333 = vmatpush.msra.mxu0 0.0
        %334 = vmatpush.msra.mxu0 0.0
        %335 = vmatpush.msra.mxu0 0.0
        %336 = vmatpush.msra.mxu0 0.0
        %337 = vmatpush.msra.mxu0 0.0
        %338 = vmatpush.msra.mxu0 %v318
        %339 = vmatmul.f32.gmra.mxu0 %v321
        %v340 = vpop.f32.mrf.mxu0
        %v341 = vadd.f32 0.0, %v340
        %342 = vdwg.mxu0
        %v343 = vxor.u32 %v273, 2147483648
        %v344 = vmul.f32 %v343, 1.442695
        %v345 = vpow.pop %v344
        %v346 = vadd.f32 %v345, 1.0
        %v347 = vrcp.pop %v346
        %v348 = vmul.f32 %v346, %v347
        %v349 = vsub.f32 1.0, %v348
        %v350 = vmul.f32 %v347, %v349
        %v351 = vadd.f32 %v347, %v350
        %vm352 = vweird.f32 %v346
        %vm353 = vweird.f32 %v347
        %vm354 = vmor %vm352, %vm353
        %v355 = vsel %vm354, %v347, %v351
        %v356 = vand.u32 2147483647, %v346
        %vm357 = vcmp.eq.f32.partialorder %v356, 8.507059e+37
        %v358 = vand.u32 %v346, 2147483648
        %v359 = vor.u32 1.1754944e-38, %v358
        %v360 = vsel %vm357, %v359, %v355
        %v361 = vmul.f32 1.0, %v360
        %363 = vrot.lane.b32.xlu0 %v361, 32
        %v364 = vpop.permute.xlu0 %363
        %v366 = vmul.f32 %v341, %v364
        %v367 = vld [vmem:[#allocation7 + $0x28] sm:$0xff]
        %v368 = vld [vmem:[#allocation7 + $0x30] sm:$0xff]
        %369 = vrot.lane.b32.xlu0 %v273, 112
        %v370 = vpop.permute.xlu0 %369
        %371 = vrot.lane.b32.xlu0 %v273, 80
        %v372 = vpop.permute.xlu0 %371
        %v373 = vsel %vm278, %v370, 0
        %v375 = vsel %vm278, %v372, 0
        %377 = vmatpush.xpose.msra.mxu0 0.0
        %378 = vmatpush.xpose.msra.mxu0 0.0
        %379 = vmatpush.xpose.msra.mxu0 0.0
        %380 = vmatpush.xpose.msra.mxu0 0.0
        %381 = vmatpush.xpose.msra.mxu0 0.0
        %382 = vmatpush.xpose.msra.mxu0 0.0
        %383 = vmatpush.xpose.msra.mxu0 0.0
        %384 = vmatpush.xpose.msra.mxu0 0.0
        %385 = vmatpush.xpose.msra.mxu0 0.0
        %386 = vmatpush.xpose.msra.mxu0 0.0
        %387 = vmatpush.xpose.msra.mxu0 0.0
        %388 = vmatpush.xpose.msra.mxu0 0.0
        %389 = vmatpush.xpose.msra.mxu0 0.0
        %390 = vmatpush.xpose.msra.mxu0 0.0
        %391 = vmatpush.xpose.msra.mxu0 0.0
        %392 = vmatpush.xpose.msra.mxu0 %v375
        %393 = vmatmul.f32.gmra.mxu0 %v373
        %v394 = vpop.f32.mrf.mxu0
        %v395 = vadd.f32 0.0, %v394
        %396 = vdwg.mxu0
        %v397 = vmul.f32 %v395, 0.25
        %v398 = vadd.f32 %v397, %v244
        %v399 = vsel %vm305, %v398, -inf
        %400 = vmax.xlane.f32.xlu0 %v399
        %v401 = vpop.xlane.xlu0 %400
        %v402 = vsub.f32 %v398, %v401
        %v403 = vmul.f32 %v402, 1.442695
        %v404 = vpow.pop %v403
        %v405 = vsel %vm305, %v404, 0.0
        %406 = vadd.xlane.f32.xlu0 %v405
        %v407 = vpop.xlane.xlu0 %406
        %v408 = vrcp.pop %v407
        %v409 = vmul.f32 %v404, %v408
        %410 = vrot.lane.b32.xlu0 %v273, 48
        %v411 = vpop.permute.xlu0 %410
        %v414 = vsel %vm305, %v409, 0
        %416 = vmatpush.msra.mxu0 0.0
        %417 = vmatpush.msra.mxu0 0.0
        %418 = vmatpush.msra.mxu0 0.0
        %419 = vmatpush.msra.mxu0 0.0
        %420 = vmatpush.msra.mxu0 0.0
        %421 = vmatpush.msra.mxu0 0.0
        %422 = vmatpush.msra.mxu0 0.0
        %423 = vmatpush.msra.mxu0 0.0
        %424 = vmatpush.msra.mxu0 0.0
        %425 = vmatpush.msra.mxu0 0.0
        %426 = vmatpush.msra.mxu0 0.0
        %427 = vmatpush.msra.mxu0 0.0
        %428 = vmatpush.msra.mxu0 0.0
        %429 = vmatpush.msra.mxu0 0.0
        %430 = vmatpush.msra.mxu0 0.0
        %431 = vmatpush.msra.mxu0 %v411
        %432 = vmatmul.f32.gmra.mxu0 %v414
        %v433 = vpop.f32.mrf.mxu0
        %v434 = vadd.f32 0.0, %v433
        %435 = vdwg.mxu0
        %436 = vrot.lane.b32.xlu0 %v361, 16
        %v437 = vpop.permute.xlu0 %436
        %v439 = vmul.f32 %v434, %v437
        %v440 = vld [vmem:[#allocation7 + $0x38] sm:$0xff]
        %v441 = vld [vmem:[#allocation7 + $0x40] sm:$0xff]
        %v443 = vsel %vm278, %v439, 0
        %445 = vmatpush.msra.mxu0 0.0
        %446 = vmatpush.msra.mxu0 0.0
        %447 = vmatpush.msra.mxu0 0.0
        %448 = vmatpush.msra.mxu0 0.0
        %449 = vmatpush.msra.mxu0 0.0
        %450 = vmatpush.msra.mxu0 0.0
        %451 = vmatpush.msra.mxu0 0.0
        %452 = vmatpush.msra.mxu0 0.0
        %453 = vmatpush.msra.mxu0 0.0
        %454 = vmatpush.msra.mxu0 0.0
        %455 = vmatpush.msra.mxu0 0.0
        %456 = vmatpush.msra.mxu0 0.0
        %457 = vmatpush.msra.mxu0 0.0
        %458 = vmatpush.msra.mxu0 0.0
        %459 = vmatpush.msra.mxu0 %v441
        %460 = vmatpush.msra.mxu0 %v440
        %461 = vmatmul.f32.gmra.mxu0 %v443
        %v462 = vpop.f32.mrf.mxu0
        %v463 = vadd.f32 0.0, %v462
        %464 = vdwg.mxu0
        %v466 = vsel %vm278, %v366, 0
        %468 = vmatpush.msra.mxu0 0.0
        %469 = vmatpush.msra.mxu0 0.0
        %470 = vmatpush.msra.mxu0 0.0
        %471 = vmatpush.msra.mxu0 0.0
        %472 = vmatpush.msra.mxu0 0.0
        %473 = vmatpush.msra.mxu0 0.0
        %474 = vmatpush.msra.mxu0 0.0
        %475 = vmatpush.msra.mxu0 0.0
        %476 = vmatpush.msra.mxu0 0.0
        %477 = vmatpush.msra.mxu0 0.0
        %478 = vmatpush.msra.mxu0 0.0
        %479 = vmatpush.msra.mxu0 0.0
        %480 = vmatpush.msra.mxu0 0.0
        %481 = vmatpush.msra.mxu0 0.0
        %482 = vmatpush.msra.mxu0 %v368
        %483 = vmatpush.msra.mxu0 %v367
        %484 = vmatmul.f32.gmra.mxu0 %v466
        %v485 = vpop.f32.mrf.mxu0
        %v486 = vadd.f32 %v463, %v485
        %487 = vdwg.mxu0
        %v488 = vld [vmem:[#allocation7 + $0x48] sm:$0x1]
        %v489 = vperm.slane %v488, 0
        %v490 = vadd.f32 %v486, %v489
        %v491 = vadd.f32 %v243, %v490
        %v492 = vld [vmem:[#allocation7 + $0x50] sm:$0x1]
        %v493 = vld [vmem:[#allocation7 + $0x58] sm:$0x1]
        %v494 = vsel %vm251, %v491, 0.0
        %495 = vadd.xlane.f32.xlu0 %v494
        %v496 = vpop.xlane.xlu0 %495
        %v497 = vrcp.pop 32.0
        %v498 = vmul.f32 32.0, %v497
        %v499 = vsub.f32 1.0, %v498
        %v500 = vmul.f32 %v497, %v499
        %v501 = vadd.f32 %v497, %v500
        %vm502 = vweird.f32 %v497
        %v503 = vsel %vm502, %v497, %v501
        %v504 = vmul.f32 %v496, %v503
        %v505 = vsub.f32 %v491, %v504
        %v506 = vmul.f32 %v505, %v505
        %v507 = vsel %vm251, %v506, 0.0
        %508 = vadd.xlane.f32.xlu0 %v507
        %v509 = vpop.xlane.xlu0 %508
        %v510 = vmul.f32 %v509, %v503
        %v511 = vadd.f32 %v510, 1e-05
        %v512 = vrsqrt.pop %v511
        %v513 = vmul.f32 %v512, %v511
        %v514 = vmul.f32 %v513, %v512
        %v515 = vmul.f32 0.5, %v514
        %v516 = vsub.f32 1.5, %v515
        %v517 = vmul.f32 %v512, %v516
        %vm518 = vweird.f32 %v511
        %vm519 = vweird.f32 %v512
        %vm520 = vmor %vm518, %vm519
        %v521 = vsel %vm520, %v512, %v517
        %v522 = vmul.f32 %v505, %v521
        %v523 = vperm.slane %v492, 0
        %v524 = vmul.f32 %v522, %v523
        %v525 = vperm.slane %v493, 0
        %v526 = vadd.f32 %v524, %v525
        %v527 = vld [vmem:[#allocation7 + $0x80] sm:$0xff]
        %v528 = vld [vmem:[#allocation7 + $0x88] sm:$0xff]
        %v529 = vld [vmem:[#allocation7 + $0x90] sm:$0xff]
        %v530 = vld [vmem:[#allocation7 + $0x98] sm:$0xff]
        %v531 = vld [vmem:[#allocation7 + $0x60] sm:$0x1]
        %v532 = vperm.slane %v531, 0
        %v534 = vsel %vm251, %v526, 0
        %536 = vmatpush.msra.mxu0 0.0
        %537 = vmatpush.msra.mxu0 0.0
        %538 = vmatpush.msra.mxu0 0.0
        %539 = vmatpush.msra.mxu0 0.0
        %540 = vmatpush.msra.mxu0 0.0
        %541 = vmatpush.msra.mxu0 0.0
        %542 = vmatpush.msra.mxu0 0.0
        %543 = vmatpush.msra.mxu0 0.0
        %544 = vmatpush.msra.mxu0 0.0
        %545 = vmatpush.msra.mxu0 0.0
        %546 = vmatpush.msra.mxu0 0.0
        %547 = vmatpush.msra.mxu0 0.0
        %548 = vmatpush.msra.mxu0 %v530
        %549 = vmatpush.msra.mxu0 %v529
        %550 = vmatpush.msra.mxu0 %v528
        %551 = vmatpush.msra.mxu0 %v527
        %552 = vmatmul.f32.gmra.mxu0 %v534
        %v553 = vpop.f32.mrf.mxu0
        %v554 = vadd.f32 %v532, %v553
        %555 = vdwg.mxu0
        %v556 = vmax.f32 %v554, 0.0
        %v557 = vld [vmem:[#allocation7 + $0xa0] sm:$0xff]
        %v558 = vld [vmem:[#allocation7 + $0xa8] sm:$0xff]
        %v559 = vld [vmem:[#allocation7 + $0xb0] sm:$0xff]
        %v560 = vld [vmem:[#allocation7 + $0xb8] sm:$0xff]
        %v561 = vld [vmem:[#allocation7 + $0xc0] sm:$0xff]
        %v562 = vld [vmem:[#allocation7 + $0xc8] sm:$0xff]
        %v563 = vld [vmem:[#allocation7 + $0xd0] sm:$0xff]
        %v564 = vld [vmem:[#allocation7 + $0xd8] sm:$0xff]
        %v565 = vld [vmem:[#allocation7 + $0x68] sm:$0x1]
        %v566 = vperm.slane %v565, 0
        %vm567 = vcmask 523264
        %v569 = vsel %vm567, %v556, 0
        %571 = vmatpush.msra.mxu0 0.0
        %572 = vmatpush.msra.mxu0 0.0
        %573 = vmatpush.msra.mxu0 0.0
        %574 = vmatpush.msra.mxu0 0.0
        %575 = vmatpush.msra.mxu0 0.0
        %576 = vmatpush.msra.mxu0 0.0
        %577 = vmatpush.msra.mxu0 0.0
        %578 = vmatpush.msra.mxu0 0.0
        %579 = vmatpush.msra.mxu0 %v564
        %580 = vmatpush.msra.mxu0 %v563
        %581 = vmatpush.msra.mxu0 %v562
        %582 = vmatpush.msra.mxu0 %v561
        %583 = vmatpush.msra.mxu0 %v560
        %584 = vmatpush.msra.mxu0 %v559
        %585 = vmatpush.msra.mxu0 %v558
        %586 = vmatpush.msra.mxu0 %v557
        %587 = vmatmul.f32.gmra.mxu0 %v569
        %v588 = vpop.f32.mrf.mxu0
        %v589 = vadd.f32 %v566, %v588
        %590 = vdwg.mxu0
        %v591 = vadd.f32 %v526, %v589
        %v592 = vld [vmem:[#allocation7 + $0x70] sm:$0x1]
        %v593 = vld [vmem:[#allocation7 + $0x78] sm:$0x1]
        %v594 = vsel %vm251, %v591, 0.0
        %595 = vadd.xlane.f32.xlu0 %v594
        %v596 = vpop.xlane.xlu0 %595
        %v597 = vmul.f32 %v596, %v503
        %v598 = vsub.f32 %v591, %v597
        %v599 = vmul.f32 %v598, %v598
        %v600 = vsel %vm251, %v599, 0.0
        %601 = vadd.xlane.f32.xlu0 %v600
        %v602 = vpop.xlane.xlu0 %601
        %v603 = vmul.f32 %v602, %v503
        %v604 = vadd.f32 %v603, 1e-05
        %v605 = vrsqrt.pop %v604
        %v606 = vmul.f32 %v605, %v604
        %v607 = vmul.f32 %v606, %v605
        %v608 = vmul.f32 0.5, %v607
        %v609 = vsub.f32 1.5, %v608
        %v610 = vmul.f32 %v605, %v609
        %vm611 = vweird.f32 %v604
        %vm612 = vweird.f32 %v605
        %vm613 = vmor %vm611, %vm612
        %v614 = vsel %vm613, %v605, %v610
        %v615 = vmul.f32 %v598, %v614
        %v616 = vperm.slane %v592, 0
        %v617 = vmul.f32 %v615, %v616
        %v618 = vperm.slane %v593, 0
        %v619 = vadd.f32 %v617, %v618
        %s620 = scalar_lea.vmem [#allocation7], 224
        %v621 = vld [vmem:[%s620] sm:$0xff]
        %v622 = vld [vmem:[%s620 + $0x8] sm:$0xff]
        %v623 = vld [vmem:[%s620 + $0x10] sm:$0xff]
        %v624 = vld [vmem:[%s620 + $0x18] sm:$0xff]
        %v625 = vld [vmem:[%s620 + $0x20] sm:$0x1]
        %v626 = vperm.slane %v625, 0
        %v628 = vsel %vm251, %v619, 0
        %630 = vmatpush.msra.mxu0 0.0
        %631 = vmatpush.msra.mxu0 0.0
        %632 = vmatpush.msra.mxu0 0.0
        %633 = vmatpush.msra.mxu0 0.0
        %634 = vmatpush.msra.mxu0 0.0
        %635 = vmatpush.msra.mxu0 0.0
        %636 = vmatpush.msra.mxu0 0.0
        %637 = vmatpush.msra.mxu0 0.0
        %638 = vmatpush.msra.mxu0 0.0
        %639 = vmatpush.msra.mxu0 0.0
        %640 = vmatpush.msra.mxu0 0.0
        %641 = vmatpush.msra.mxu0 0.0
        %642 = vmatpush.msra.mxu0 %v624
        %643 = vmatpush.msra.mxu0 %v623
        %644 = vmatpush.msra.mxu0 %v622
        %645 = vmatpush.msra.mxu0 %v621
        %646 = vmatmul.f32.gmra.mxu0 %v628
        %v647 = vpop.f32.mrf.mxu0
        %v648 = vadd.f32 %v626, %v647
        %649 = vdwg.mxu0
        %651 = vrot.lane.b32.xlu0 %v648, 96
        %v652 = vpop.permute.xlu0 %651
        %v653 = vsel %vm278, %v648, 0
        %v655 = vsel %vm278, %v652, 0
        %657 = vmatpush.xpose.msra.mxu0 0.0
        %658 = vmatpush.xpose.msra.mxu0 0.0
        %659 = vmatpush.xpose.msra.mxu0 0.0
        %660 = vmatpush.xpose.msra.mxu0 0.0
        %661 = vmatpush.xpose.msra.mxu0 0.0
        %662 = vmatpush.xpose.msra.mxu0 0.0
        %663 = vmatpush.xpose.msra.mxu0 0.0
        %664 = vmatpush.xpose.msra.mxu0 0.0
        %665 = vmatpush.xpose.msra.mxu0 0.0
        %666 = vmatpush.xpose.msra.mxu0 0.0
        %667 = vmatpush.xpose.msra.mxu0 0.0
        %668 = vmatpush.xpose.msra.mxu0 0.0
        %669 = vmatpush.xpose.msra.mxu0 0.0
        %670 = vmatpush.xpose.msra.mxu0 0.0
        %671 = vmatpush.xpose.msra.mxu0 0.0
        %672 = vmatpush.xpose.msra.mxu0 %v655
        %673 = vmatmul.f32.gmra.mxu0 %v653
        %v674 = vpop.f32.mrf.mxu0
        %v675 = vadd.f32 0.0, %v674
        %676 = vdwg.mxu0
        %v677 = vmul.f32 %v675, 0.25
        %v678 = vadd.f32 %v677, %v244
        %v679 = vsel %vm305, %v678, -inf
        %680 = vmax.xlane.f32.xlu0 %v679
        %v681 = vpop.xlane.xlu0 %680
        %v682 = vsub.f32 %v678, %v681
        %v683 = vmul.f32 %v682, 1.442695
        %v684 = vpow.pop %v683
        %v685 = vsel %vm305, %v684, 0.0
        %686 = vadd.xlane.f32.xlu0 %v685
        %v687 = vpop.xlane.xlu0 %686
        %v688 = vrcp.pop %v687
        %v689 = vmul.f32 %v684, %v688
        %690 = vrot.lane.b32.xlu0 %v648, 64
        %v691 = vpop.permute.xlu0 %690
        %v694 = vsel %vm305, %v689, 0
        %696 = vmatpush.msra.mxu0 0.0
        %697 = vmatpush.msra.mxu0 0.0
        %698 = vmatpush.msra.mxu0 0.0
        %699 = vmatpush.msra.mxu0 0.0
        %700 = vmatpush.msra.mxu0 0.0
        %701 = vmatpush.msra.mxu0 0.0
        %702 = vmatpush.msra.mxu0 0.0
        %703 = vmatpush.msra.mxu0 0.0
        %704 = vmatpush.msra.mxu0 0.0
        %705 = vmatpush.msra.mxu0 0.0
        %706 = vmatpush.msra.mxu0 0.0
        %707 = vmatpush.msra.mxu0 0.0
        %708 = vmatpush.msra.mxu0 0.0
        %709 = vmatpush.msra.mxu0 0.0
        %710 = vmatpush.msra.mxu0 0.0
        %711 = vmatpush.msra.mxu0 %v691
        %712 = vmatmul.f32.gmra.mxu0 %v694
        %v713 = vpop.f32.mrf.mxu0
        %v714 = vadd.f32 0.0, %v713
        %715 = vdwg.mxu0
        %v716 = vxor.u32 %v648, 2147483648
        %v717 = vmul.f32 %v716, 1.442695
        %v718 = vpow.pop %v717
        %v719 = vadd.f32 %v718, 1.0
        %v720 = vrcp.pop %v719
        %v721 = vmul.f32 %v719, %v720
        %v722 = vsub.f32 1.0, %v721
        %v723 = vmul.f32 %v720, %v722
        %v724 = vadd.f32 %v720, %v723
        %vm725 = vweird.f32 %v719
        %vm726 = vweird.f32 %v720
        %vm727 = vmor %vm725, %vm726
        %v728 = vsel %vm727, %v720, %v724
        %v729 = vand.u32 2147483647, %v719
        %vm730 = vcmp.eq.f32.partialorder %v729, 8.507059e+37
        %v731 = vand.u32 %v719, 2147483648
        %v732 = vor.u32 1.1754944e-38, %v731
        %v733 = vsel %vm730, %v732, %v728
        %v734 = vmul.f32 1.0, %v733
        %736 = vrot.lane.b32.xlu0 %v734, 32
        %v737 = vpop.permute.xlu0 %736
        %v739 = vmul.f32 %v714, %v737
        %v740 = vld [vmem:[%s620 + $0x28] sm:$0xff]
        %v741 = vld [vmem:[%s620 + $0x30] sm:$0xff]
        %742 = vrot.lane.b32.xlu0 %v648, 112
        %v743 = vpop.permute.xlu0 %742
        %744 = vrot.lane.b32.xlu0 %v648, 80
        %v745 = vpop.permute.xlu0 %744
        %v746 = vsel %vm278, %v743, 0
        %v748 = vsel %vm278, %v745, 0
        %750 = vmatpush.xpose.msra.mxu0 0.0
        %751 = vmatpush.xpose.msra.mxu0 0.0
        %752 = vmatpush.xpose.msra.mxu0 0.0
        %753 = vmatpush.xpose.msra.mxu0 0.0
        %754 = vmatpush.xpose.msra.mxu0 0.0
        %755 = vmatpush.xpose.msra.mxu0 0.0
        %756 = vmatpush.xpose.msra.mxu0 0.0
        %757 = vmatpush.xpose.msra.mxu0 0.0
        %758 = vmatpush.xpose.msra.mxu0 0.0
        %759 = vmatpush.xpose.msra.mxu0 0.0
        %760 = vmatpush.xpose.msra.mxu0 0.0
        %761 = vmatpush.xpose.msra.mxu0 0.0
        %762 = vmatpush.xpose.msra.mxu0 0.0
        %763 = vmatpush.xpose.msra.mxu0 0.0
        %764 = vmatpush.xpose.msra.mxu0 0.0
        %765 = vmatpush.xpose.msra.mxu0 %v748
        %766 = vmatmul.f32.gmra.mxu0 %v746
        %v767 = vpop.f32.mrf.mxu0
        %v768 = vadd.f32 0.0, %v767
        %769 = vdwg.mxu0
        %v770 = vmul.f32 %v768, 0.25
        %v771 = vadd.f32 %v770, %v244
        %v772 = vsel %vm305, %v771, -inf
        %773 = vmax.xlane.f32.xlu0 %v772
        %v774 = vpop.xlane.xlu0 %773
        %v775 = vsub.f32 %v771, %v774
        %v776 = vmul.f32 %v775, 1.442695
        %v777 = vpow.pop %v776
        %v778 = vsel %vm305, %v777, 0.0
        %779 = vadd.xlane.f32.xlu0 %v778
        %v780 = vpop.xlane.xlu0 %779
        %v781 = vrcp.pop %v780
        %v782 = vmul.f32 %v777, %v781
        %783 = vrot.lane.b32.xlu0 %v648, 48
        %v784 = vpop.permute.xlu0 %783
        %v787 = vsel %vm305, %v782, 0
        %789 = vmatpush.msra.mxu0 0.0
        %790 = vmatpush.msra.mxu0 0.0
        %791 = vmatpush.msra.mxu0 0.0
        %792 = vmatpush.msra.mxu0 0.0
        %793 = vmatpush.msra.mxu0 0.0
        %794 = vmatpush.msra.mxu0 0.0
        %795 = vmatpush.msra.mxu0 0.0
        %796 = vmatpush.msra.mxu0 0.0
        %797 = vmatpush.msra.mxu0 0.0
        %798 = vmatpush.msra.mxu0 0.0
        %799 = vmatpush.msra.mxu0 0.0
        %800 = vmatpush.msra.mxu0 0.0
        %801 = vmatpush.msra.mxu0 0.0
        %802 = vmatpush.msra.mxu0 0.0
        %803 = vmatpush.msra.mxu0 0.0
        %804 = vmatpush.msra.mxu0 %v784
        %805 = vmatmul.f32.gmra.mxu0 %v787
        %v806 = vpop.f32.mrf.mxu0
        %v807 = vadd.f32 0.0, %v806
        %808 = vdwg.mxu0
        %809 = vrot.lane.b32.xlu0 %v734, 16
        %v810 = vpop.permute.xlu0 %809
        %v812 = vmul.f32 %v807, %v810
        %v813 = vld [vmem:[%s620 + $0x38] sm:$0xff]
        %v814 = vld [vmem:[%s620 + $0x40] sm:$0xff]
        %v816 = vsel %vm278, %v812, 0
        %818 = vmatpush.msra.mxu0 0.0
        %819 = vmatpush.msra.mxu0 0.0
        %820 = vmatpush.msra.mxu0 0.0
        %821 = vmatpush.msra.mxu0 0.0
        %822 = vmatpush.msra.mxu0 0.0
        %823 = vmatpush.msra.mxu0 0.0
        %824 = vmatpush.msra.mxu0 0.0
        %825 = vmatpush.msra.mxu0 0.0
        %826 = vmatpush.msra.mxu0 0.0
        %827 = vmatpush.msra.mxu0 0.0
        %828 = vmatpush.msra.mxu0 0.0
        %829 = vmatpush.msra.mxu0 0.0
        %830 = vmatpush.msra.mxu0 0.0
        %831 = vmatpush.msra.mxu0 0.0
        %832 = vmatpush.msra.mxu0 %v814
        %833 = vmatpush.msra.mxu0 %v813
        %834 = vmatmul.f32.gmra.mxu0 %v816
        %v835 = vpop.f32.mrf.mxu0
        %v836 = vadd.f32 0.0, %v835
        %837 = vdwg.mxu0
        %v839 = vsel %vm278, %v739, 0
        %841 = vmatpush.msra.mxu0 0.0
        %842 = vmatpush.msra.mxu0 0.0
        %843 = vmatpush.msra.mxu0 0.0
        %844 = vmatpush.msra.mxu0 0.0
        %845 = vmatpush.msra.mxu0 0.0
        %846 = vmatpush.msra.mxu0 0.0
        %847 = vmatpush.msra.mxu0 0.0
        %848 = vmatpush.msra.mxu0 0.0
        %849 = vmatpush.msra.mxu0 0.0
        %850 = vmatpush.msra.mxu0 0.0
        %851 = vmatpush.msra.mxu0 0.0
        %852 = vmatpush.msra.mxu0 0.0
        %853 = vmatpush.msra.mxu0 0.0
        %854 = vmatpush.msra.mxu0 0.0
        %855 = vmatpush.msra.mxu0 %v741
        %856 = vmatpush.msra.mxu0 %v740
        %857 = vmatmul.f32.gmra.mxu0 %v839
        %v858 = vpop.f32.mrf.mxu0
        %v859 = vadd.f32 %v836, %v858
        %860 = vdwg.mxu0
        %v861 = vld [vmem:[%s620 + $0x48] sm:$0x1]
        %v862 = vperm.slane %v861, 0
        %v863 = vadd.f32 %v859, %v862
        %v864 = vadd.f32 %v619, %v863
        %v865 = vld [vmem:[%s620 + $0x50] sm:$0x1]
        %v866 = vld [vmem:[%s620 + $0x58] sm:$0x1]
        %v867 = vsel %vm251, %v864, 0.0
        %868 = vadd.xlane.f32.xlu0 %v867
        %v869 = vpop.xlane.xlu0 %868
        %v870 = vmul.f32 %v869, %v503
        %v871 = vsub.f32 %v864, %v870
        %v872 = vmul.f32 %v871, %v871
        %v873 = vsel %vm251, %v872, 0.0
        %874 = vadd.xlane.f32.xlu0 %v873
        %v875 = vpop.xlane.xlu0 %874
        %v876 = vmul.f32 %v875, %v503
        %v877 = vadd.f32 %v876, 1e-05
        %v878 = vrsqrt.pop %v877
        %v879 = vmul.f32 %v878, %v877
        %v880 = vmul.f32 %v879, %v878
        %v881 = vmul.f32 0.5, %v880
        %v882 = vsub.f32 1.5, %v881
        %v883 = vmul.f32 %v878, %v882
        %vm884 = vweird.f32 %v877
        %vm885 = vweird.f32 %v878
        %vm886 = vmor %vm884, %vm885
        %v887 = vsel %vm886, %v878, %v883
        %v888 = vmul.f32 %v871, %v887
        %v889 = vperm.slane %v865, 0
        %v890 = vmul.f32 %v888, %v889
        %v891 = vperm.slane %v866, 0
        %v892 = vadd.f32 %v890, %v891
        %v893 = vld [vmem:[%s620 + $0x80] sm:$0xff]
        %v894 = vld [vmem:[%s620 + $0x88] sm:$0xff]
        %v895 = vld [vmem:[%s620 + $0x90] sm:$0xff]
        %v896 = vld [vmem:[%s620 + $0x98] sm:$0xff]
        %v897 = vld [vmem:[%s620 + $0x60] sm:$0x1]
        %v898 = vperm.slane %v897, 0
        %v900 = vsel %vm251, %v892, 0
        %902 = vmatpush.msra.mxu0 0.0
        %903 = vmatpush.msra.mxu0 0.0
        %904 = vmatpush.msra.mxu0 0.0
        %905 = vmatpush.msra.mxu0 0.0
        %906 = vmatpush.msra.mxu0 0.0
        %907 = vmatpush.msra.mxu0 0.0
        %908 = vmatpush.msra.mxu0 0.0
        %909 = vmatpush.msra.mxu0 0.0
        %910 = vmatpush.msra.mxu0 0.0
        %911 = vmatpush.msra.mxu0 0.0
        %912 = vmatpush.msra.mxu0 0.0
        %913 = vmatpush.msra.mxu0 0.0
        %914 = vmatpush.msra.mxu0 %v896
        %915 = vmatpush.msra.mxu0 %v895
        %916 = vmatpush.msra.mxu0 %v894
        %917 = vmatpush.msra.mxu0 %v893
        %918 = vmatmul.f32.gmra.mxu0 %v900
        %v919 = vpop.f32.mrf.mxu0
        %v920 = vadd.f32 %v898, %v919
        %921 = vdwg.mxu0
        %v922 = vmax.f32 %v920, 0.0
        %v923 = vld [vmem:[%s620 + $0xa0] sm:$0xff]
        %v924 = vld [vmem:[%s620 + $0xa8] sm:$0xff]
        %v925 = vld [vmem:[%s620 + $0xb0] sm:$0xff]
        %v926 = vld [vmem:[%s620 + $0xb8] sm:$0xff]
        %v927 = vld [vmem:[%s620 + $0xc0] sm:$0xff]
        %v928 = vld [vmem:[%s620 + $0xc8] sm:$0xff]
        %v929 = vld [vmem:[%s620 + $0xd0] sm:$0xff]
        %v930 = vld [vmem:[%s620 + $0xd8] sm:$0xff]
        %v931 = vld [vmem:[%s620 + $0x68] sm:$0x1]
        %v932 = vperm.slane %v931, 0
        %v934 = vsel %vm567, %v922, 0
        %936 = vmatpush.msra.mxu0 0.0
        %937 = vmatpush.msra.mxu0 0.0
        %938 = vmatpush.msra.mxu0 0.0
        %939 = vmatpush.msra.mxu0 0.0
        %940 = vmatpush.msra.mxu0 0.0
        %941 = vmatpush.msra.mxu0 0.0
        %942 = vmatpush.msra.mxu0 0.0
        %943 = vmatpush.msra.mxu0 0.0
        %944 = vmatpush.msra.mxu0 %v930
        %945 = vmatpush.msra.mxu0 %v929
        %946 = vmatpush.msra.mxu0 %v928
        %947 = vmatpush.msra.mxu0 %v927
        %948 = vmatpush.msra.mxu0 %v926
        %949 = vmatpush.msra.mxu0 %v925
        %950 = vmatpush.msra.mxu0 %v924
        %951 = vmatpush.msra.mxu0 %v923
        %952 = vmatmul.f32.gmra.mxu0 %v934
        %v953 = vpop.f32.mrf.mxu0
        %v954 = vadd.f32 %v932, %v953
        %955 = vdwg.mxu0
        %v956 = vadd.f32 %v892, %v954
        %v957 = vld [vmem:[%s620 + $0x70] sm:$0x1]
        %v958 = vld [vmem:[%s620 + $0x78] sm:$0x1]
        %v959 = vsel %vm251, %v956, 0.0
        %960 = vadd.xlane.f32.xlu0 %v959
        %v961 = vpop.xlane.xlu0 %960
        %v962 = vmul.f32 %v961, %v503
        %v963 = vsub.f32 %v956, %v962
        %v964 = vmul.f32 %v963, %v963
        %v965 = vsel %vm251, %v964, 0.0
        %966 = vadd.xlane.f32.xlu0 %v965
        %v967 = vpop.xlane.xlu0 %966
        %v968 = vmul.f32 %v967, %v503
        %v969 = vadd.f32 %v968, 1e-05
        %v970 = vrsqrt.pop %v969
        %v971 = vmul.f32 %v970, %v969
        %v972 = vmul.f32 %v971, %v970
        %v973 = vmul.f32 0.5, %v972
        %v974 = vsub.f32 1.5, %v973
        %v975 = vmul.f32 %v970, %v974
        %vm976 = vweird.f32 %v969
        %vm977 = vweird.f32 %v970
        %vm978 = vmor %vm976, %vm977
        %v979 = vsel %vm978, %v970, %v975
        %v980 = vmul.f32 %v963, %v979
        %v981 = vperm.slane %v957, 0
        %v982 = vmul.f32 %v980, %v981
        %v983 = vperm.slane %v958, 0
        %v984 = vadd.f32 %v982, %v983
        %985 = vst.msk [vmem:[%s242] sm:$0xff] %vm251, %v984
        %s986 = sand.u32 %s104, 1
        %s987 = scalar_lea.sflag [#allocation4], %s986
        %s988 = sand.u32 %s104, 1
        %s989 = smul.addr %s988, 8
        %s990 = scalar_lea.vmem [#allocation8], %s989
        // Predicated region
        $region45: #{tpu_custom_call.1} parent=31 // pred_check
          %p991 = pneg %p114
        $region46: #{tpu_custom_call.1} parent=31 // pred_check_branch
          %993 = sbr.rel (%p991) target = $region48
        $region47: #{tpu_custom_call.1} parent=31 // pred_region
          %995 = vsyncadd %s987, 0
          %s996 = smul.addr %s23, 8
          %s997 = scalar_lea.hbm %s3, %s996
          %s999 = sshll.u32 %s990, 4
          %s1000 = int_to_ptr.vmem [resolvable:$true] %s999
          %s1001 = sshll.u32 %s997, 4
          %s1002 = int_to_ptr.hbm [resolvable:$true] %s1001
          %1004 = dma.vmem_to_hbm [thread:$0]  %s1000, 128, %s1002, %s987
        $region48: #{tpu_custom_call.1} parent=31 // pred_fallthru
          _
      $region32: #{tpu_custom_call.1} parent=5 // pred_fallthru
        _
      %p1005 = scmp.le.s32.totalorder 2, %s18
      // Predicated region
      $region49: #{tpu_custom_call.1} parent=5 // pred_check
        %p1006 = pneg %p1005
      $region50: #{tpu_custom_call.1} parent=5 // pred_check_branch
        %1008 = sbr.rel (%p1006) target = $region52
      $region51: #{tpu_custom_call.1} parent=5 // pred_region
        %s1009 = ssub.s32 %s18, 2
        // Predicated region
        $region53: #{tpu_custom_call.1} parent=51 // pred_check
          %p1010 = pneg %p120
        $region54: #{tpu_custom_call.1} parent=51 // pred_check_branch
          %1012 = sbr.rel (%p1010) target = $region56
        $region55: #{tpu_custom_call.1} parent=51 // pred_region
          %s1013 = sand.u32 %s105, 1
          %s1014 = scalar_lea.sflag [#allocation4], %s1013
          %s1015 = sand.u32 %s105, 1
          %s1016 = smul.addr %s1015, 8
          %s1017 = scalar_lea.vmem [#allocation8], %s1016
          %1019 = dma.done %s1014, 128
        $region56: #{tpu_custom_call.1} parent=51 // pred_fallthru
          _
      $region52: #{tpu_custom_call.1} parent=5 // pred_fallthru
        _
    $region6: #{tpu_custom_call.1} parent=1 // loop_footer
      %s22 = sadd.s32 1, %s18
    $region7: #{tpu_custom_call.1} parent=1 // loop_footer_branch
      %17 = sbr.rel target = $region3
    $region8: #{tpu_custom_call.1} parent=1 // loop_exit
      _
    %1020 = vsyncpa [#allocation3], 1
    %s1021 = scalar_lea.sflag [#allocation3], 1
    %1022 = vsyncpa %s1021, 1
    %1023 = vsyncpa [#allocation6], 1
    %s1024 = scalar_lea.sflag [#allocation6], 1
    %1025 = vsyncpa %s1024, 1
    %1026 = vsyncpa [#allocation4], 1
    %s1027 = scalar_lea.sflag [#allocation4], 1
    %1028 = vsyncpa %s1027, 1

</llo_original>
